<compile_context>
chip_gen: v7x
topology: tpu7x:2x2x1
jax: 0.10.0
libtpu: 0.0.40
codegen_flags: <defaults>
</compile_context>

<pallas_src>
import functools
import math
import random

import jax
import jax.numpy as jnp
from jax import lax
from jax.experimental import pallas as pl
from jax.experimental.pallas import tpu as pltpu


# ----------------------------------------------------------------------------
# Helpers
# ----------------------------------------------------------------------------

def _round_up(x, m):
    return ((x + m - 1) // m) * m


def _pick_tile(dim, target):
    if dim > target and dim % target == 0:
        return target
    return dim


@functools.lru_cache(maxsize=None)
def _vmem_limit_bytes():
    """Generation-aware scoped-VMEM limit (~80% of physical per-core VMEM)."""
    cap = None
    try:
        info = pltpu.get_tpu_info()
        cap = int(getattr(info, "vmem_capacity_bytes", 0) or 0)
    except Exception:
        cap = None
    if not cap:
        # Unknown generation: stay under v7x's 64 MiB physical VMEM.
        return 48 * 1024 * 1024
    return int(cap * 4 // 5)      # ~51 MiB on v7x, ~102 MiB on v5e / v6e


# ----------------------------------------------------------------------------
# Pallas kernel: feature correlation (native-MXU matmul, bf16 output)
# ----------------------------------------------------------------------------

def _corr_kernel(l_ref, r_ref, o_ref, *, inv_temp):
    # l_ref: (1, TQ, C) bf16   r_ref: (1, C, TN) bf16   o_ref: (1, TQ, TN) bf16
    acc = jnp.dot(l_ref[0], r_ref[0], preferred_element_type=jnp.float32)
    o_ref[0] = (acc * inv_temp).astype(jnp.bfloat16)


def correlation(left_flat, right_flat, temperature):
    """corr[b, p, q] = sum_c left[b,c,p] * right[b,c,q] / temperature  (bf16)."""
    B, C, HW = left_flat.shape
    TQ = _pick_tile(HW, 512)
    TN = _pick_tile(HW, 1024)
    lt = jnp.transpose(left_flat, (0, 2, 1)).astype(jnp.bfloat16)   # (B, HW, C)
    rq = right_flat.astype(jnp.bfloat16)                            # (B, C, HW)
    kernel = functools.partial(_corr_kernel, inv_temp=1.0 / float(temperature))
    return pl.pallas_call(
        kernel,
        out_shape=jax.ShapeDtypeStruct((B, HW, HW), jnp.bfloat16),
        grid=(B, HW // TQ, HW // TN),
        in_specs=[pl.BlockSpec((1, TQ, C), lambda b, q, n: (b, q, 0)),
                  pl.BlockSpec((1, C, TN), lambda b, q, n: (b, 0, n))],
        out_specs=pl.BlockSpec((1, TQ, TN), lambda b, q, n: (b, q, n)),
        compiler_params=pltpu.CompilerParams(
            dimension_semantics=("parallel", "parallel", "parallel"),
            vmem_limit_bytes=_vmem_limit_bytes()),
    )(lt, rq)


# ----------------------------------------------------------------------------
# Pallas kernel: shift-conv (stride-1 conv via per-tap shifted-window GEMMs,
# no im2col materialization) with fused bias + activation epilogue.
# ----------------------------------------------------------------------------

def _shift_conv_kernel(w_ref, b_ref, m_ref, x_ref, o_ref, *,
                       shifts, win_len, activation, inv_n_valid):
    # w_ref: (T, Cout, Cin) bf16   b_ref: (Cout, 1) f32   m_ref: (1, L) f32
    # x_ref: (1, Cin, Ltot) bf16   o_ref: (1, Cout, L) f32
    x = x_ref[0]                                      # (Cin, Ltot) bf16
    acc = None
    for t, d in enumerate(shifts):                    # taps unrolled (<= 25)
        win = x[:, d:d + win_len]                     # (Cin, L) static slice
        part = jnp.dot(w_ref[t], win, preferred_element_type=jnp.float32)
        acc = part if acc is None else acc + part
    acc = acc + b_ref[...]                            # (Cout, L) + (Cout, 1)
    if activation == "relu":
        acc = jnp.maximum(acc, 0.0)
    elif activation == "sigmoid":
        acc = jax.nn.sigmoid(acc)
    elif activation == "tanh":
        acc = jnp.tanh(acc)
    elif activation == "in_relu":
        # InstanceNorm2d(affine=False) + ReLU; padded-width junk columns are
        # excluded from the statistics via the valid-column mask.
        mask = m_ref[...]                             # (1, L)
        mean = jnp.sum(acc * mask, axis=-1, keepdims=True) * inv_n_valid
        diff = (acc - mean) * mask
        var = jnp.sum(diff * diff, axis=-1, keepdims=True) * inv_n_valid
        acc = jnp.maximum((acc - mean) * lax.rsqrt(var + 1e-5), 0.0)
    o_ref[0] = acc


def conv2d(x, weight, bias, padding, activation="none"):
    """Stride-1 conv: padded image DMA'd once, kh*kw shifted-window GEMMs."""
    # TODO(synk): tile the flattened spatial axis (with a halo) for very large
    # H, W so the per-batch padded block stays within v7x VMEM.
    B, Cin, H, W = x.shape
    Cout, _, kh, kw = weight.shape
    ph, pw = padding
    Hp, Wp = H + 2 * ph, W + 2 * pw
    Hout, Wout = Hp - kh + 1, Wp - kw + 1
    L = Hout * Wp                                    # padded-width row stride
    Ltot = _round_up(Hp * Wp + kw - 1, 128)
    xp = jnp.pad(x, ((0, 0), (0, 0), (ph, ph), (pw, pw))).reshape(B, Cin, Hp * Wp)
    xf = jnp.pad(xp, ((0, 0), (0, 0), (0, Ltot - Hp * Wp))).astype(jnp.bfloat16)
    T = kh * kw
    wt = jnp.transpose(weight.reshape(Cout, Cin, T), (2, 0, 1)).astype(jnp.bfloat16)
    b2 = bias.reshape(Cout, 1).astype(jnp.float32)
    col = jnp.arange(L, dtype=jnp.int32) % Wp
    mask = (col < Wout).astype(jnp.float32).reshape(1, L)
    shifts = tuple(i * Wp + j for i in range(kh) for j in range(kw))
    kernel = functools.partial(_shift_conv_kernel, shifts=shifts, win_len=L,
                               activation=activation,
                               inv_n_valid=1.0 / float(Hout * Wout))
    out = pl.pallas_call(
        kernel,
        out_shape=jax.ShapeDtypeStruct((B, Cout, L), jnp.float32),
        grid=(B,),
        in_specs=[pl.BlockSpec((T, Cout, Cin), lambda b: (0, 0, 0)),
                  pl.BlockSpec((Cout, 1), lambda b: (0, 0)),
                  pl.BlockSpec((1, L), lambda b: (0, 0)),
                  pl.BlockSpec((1, Cin, Ltot), lambda b: (b, 0, 0))],
        out_specs=pl.BlockSpec((1, Cout, L), lambda b: (b, 0, 0)),
        compiler_params=pltpu.CompilerParams(
            dimension_semantics=("parallel",),
            vmem_limit_bytes=_vmem_limit_bytes()),
    )(wt, b2, mask, xf)
    return out.reshape(B, Cout, Hout, Wp)[:, :, :, :Wout]


# ----------------------------------------------------------------------------
# Pallas kernel: fused final softmax + right_input gather + weighted reduction
# (tiled over the query axis p; one-hot masks built once and reused)
# ----------------------------------------------------------------------------

def _warp_kernel(corr_ref, inds_ref, rt_ref, o_ref):
    # corr_ref: (1, TP, HW) bf16   inds_ref: (1, TP, NUM) int32
    # rt_ref:   (1, HW, Cr) bf16   o_ref:    (1, TP, Cr) f32
    corr = corr_ref[0].astype(jnp.float32)            # (TP, HW)
    inds = inds_ref[0]                                # (TP, NUM)
    tp, hw = corr.shape
    num = inds.shape[-1]
    q_idx = lax.broadcasted_iota(jnp.int32, (tp, hw), 1)

    # One-hot candidate masks, built ONCE and reused below (VALU-bound kernel).
    masks, costs = [], []
    for i in range(num):
        m_i = (q_idx == inds[:, i:i + 1]).astype(jnp.float32)      # (TP, HW)
        masks.append(m_i)
        costs.append(jnp.sum(corr * m_i, axis=-1, keepdims=True))  # (TP, 1)

    # softmax over the NUM candidates
    m = costs[0]
    for c in costs[1:]:
        m = jnp.maximum(m, c)
    exps = [jnp.exp(c - m) for c in costs]
    denom = exps[0]
    for e in exps[1:]:
        denom = denom + e
    inv = pl.reciprocal(denom, approx=True)           # EUP slot, off the VALU

    # A[p, q] = softmax weight query p assigns to source position q.
    acc = masks[0] * (exps[0] * inv)
    for i in range(1, num):
        acc = acc + masks[i] * (exps[i] * inv)

    # warp_T[p, c] = sum_q A[p, q] * right_T[q, c]   (native MXU contraction)
    o_ref[0] = jnp.dot(acc.astype(jnp.bfloat16), rt_ref[0],
                       preferred_element_type=jnp.float32)


def warp_gather_reduce(corr_full, matching_inds, right_input):
    B, HW, num = matching_inds.shape
    Cr = right_input.shape[1]
    TP = _pick_tile(HW, 256)
    rt = jnp.transpose(right_input, (0, 2, 1)).astype(jnp.bfloat16)  # (B, HW, Cr)
    out = pl.pallas_call(
        _warp_kernel,
        out_shape=jax.ShapeDtypeStruct((B, HW, Cr), jnp.float32),
        grid=(B, HW // TP),
        in_specs=[pl.BlockSpec((1, TP, HW), lambda b, p: (b, p, 0)),
                  pl.BlockSpec((1, TP, num), lambda b, p: (b, p, 0)),
                  pl.BlockSpec((1, HW, Cr), lambda b, p: (b, 0, 0))],
        out_specs=pl.BlockSpec((1, TP, Cr), lambda b, p: (b, p, 0)),
        compiler_params=pltpu.CompilerParams(
            dimension_semantics=("parallel", "parallel"),
            vmem_limit_bytes=_vmem_limit_bytes()),
    )(corr_full, matching_inds, rt)
    return jnp.transpose(out, (0, 2, 1))              # (B, Cr, HW)


# ----------------------------------------------------------------------------
# Offset / index helpers (patch_match.py module-level functions)
# ----------------------------------------------------------------------------

def offset_to_inds(offset_x, offset_y):
    H, W = offset_x.shape[2], offset_x.shape[3]
    col = jnp.arange(W, dtype=offset_x.dtype).reshape(1, 1, 1, W)
    row = jnp.arange(H, dtype=offset_x.dtype).reshape(1, 1, H, 1)
    inds = (offset_y + row) * W + (offset_x + col)
    return jnp.clip(inds, 0, H * W - 1)


def inds_to_offset(inds):
    H, W = inds.shape[2], inds.shape[3]
    col = jnp.arange(W, dtype=inds.dtype).reshape(1, 1, 1, W)
    row = jnp.arange(H, dtype=inds.dtype).reshape(1, 1, H, 1)
    offset_x = (inds % W) - col
    offset_y = (inds // W) - row
    return offset_x, offset_y


# ----------------------------------------------------------------------------
# PropagationFaster / Evaluate / PatchMatchOnce
# ----------------------------------------------------------------------------

def propagation(offset_x, offset_y, ptype):
    B, N, H, W = offset_x.shape

    def expand(o):
        if ptype == 'horizontal':
            z = jnp.zeros((B, N, H, 1), o.dtype)
            a = jnp.concatenate([z, o[:, :, :, :-1]], axis=3)
            b = jnp.concatenate([o[:, :, :, 1:], z], axis=3)
        else:
            z = jnp.zeros((B, N, 1, W), o.dtype)
            a = jnp.concatenate([z, o[:, :, :-1, :]], axis=2)
            b = jnp.concatenate([o[:, :, 1:, :], z], axis=2)
        return jnp.concatenate([a, o, b], axis=1)

    return expand(offset_x), expand(offset_y)


def evaluate(corr_full, offset_x, offset_y, filter_size=3):
    # corr_full already holds sum_c(left*right)/temperature -> match_cost is a gather.
    # TODO(synk): port this gather + softmax + top_k to a Pallas kernel (reuse the
    # p-tiled one-hot machinery of _warp_kernel) — at large HW it dominates.
    B, N3, H, W = offset_x.shape
    HW = H * W
    inds = offset_to_inds(offset_x, offset_y)
    m_inds = jnp.transpose(inds.reshape(B, N3, HW), (0, 2, 1)).astype(jnp.int32)
    cost = jnp.take_along_axis(corr_full, m_inds, axis=2).astype(jnp.float32)
    cost = jax.nn.softmax(cost, axis=-1)                        # (B, HW, N3)
    k = N3 // filter_size
    topv, topi = lax.top_k(cost, k)                             # (B, HW, k)
    sel = jnp.take_along_axis(m_inds, topi, axis=2)             # (B, HW, k)
    sel_f = jnp.transpose(sel, (0, 2, 1)).reshape(B, k, H, W).astype(jnp.float32)
    off_x, off_y = inds_to_offset(sel_f)
    corr_out = jnp.transpose(topv, (0, 2, 1))                   # (B, k, HW)
    return off_x, off_y, corr_out


def patch_match_once(corr_full, offset_x, offset_y):
    prob = random.random()   # mirrors reference; seeded in __main__ for determinism
    if prob < 0.5:
        offset_x, offset_y = propagation(offset_x, offset_y, 'horizontal')
        offset_x, offset_y, _ = evaluate(corr_full, offset_x, offset_y)
        offset_x, offset_y = propagation(offset_x, offset_y, 'vertical')
        offset_x, offset_y, corr = evaluate(corr_full, offset_x, offset_y)
    else:
        offset_x, offset_y = propagation(offset_x, offset_y, 'vertical')
        offset_x, offset_y, _ = evaluate(corr_full, offset_x, offset_y)
        offset_x, offset_y = propagation(offset_x, offset_y, 'horizontal')
        offset_x, offset_y, corr = evaluate(corr_full, offset_x, offset_y)
    return offset_x, offset_y, corr


# ----------------------------------------------------------------------------
# Parameters
# ----------------------------------------------------------------------------

def _conv_init(key, cout, cin, kh, kw):
    kw_, kb_ = jax.random.split(key)
    bound = 1.0 / math.sqrt(cin * kh * kw)
    w = jax.random.uniform(kw_, (cout, cin, kh, kw), jnp.float32, -bound, bound)
    b = jax.random.uniform(kb_, (cout,), jnp.float32, -bound, bound)
    return {'w': w, 'b': b}


def init_params(key, nef, hidden_dim, num):
    keys = jax.random.split(key, 16)
    p = {}
    # initial_layer: Conv(2*nef->32,3x3) IN ReLU Conv(32->32,3x3) IN ReLU
    p['init1'] = _conv_init(keys[0], hidden_dim, nef * 2, 3, 3)
    p['init2'] = _conv_init(keys[1], hidden_dim, hidden_dim, 3, 3)
    # BasicMotionEncoder (corr has `num` channels, flow has 2*num)
    p['convc1'] = _conv_init(keys[2], 64, num, 1, 1)
    p['convf1'] = _conv_init(keys[3], 64, 2 * num, 3, 3)
    p['convf2'] = _conv_init(keys[4], 32, 64, 3, 3)
    p['conv'] = _conv_init(keys[5], hidden_dim - 2 * num, 96, 3, 3)
    # SepConvGRU(hidden=32, input=32)
    p['convz1'] = _conv_init(keys[6], hidden_dim, 2 * hidden_dim, 1, 5)
    p['convr1'] = _conv_init(keys[7], hidden_dim, 2 * hidden_dim, 1, 5)
    p['convq1'] = _conv_init(keys[8], hidden_dim, 2 * hidden_dim, 1, 5)
    p['convz2'] = _conv_init(keys[9], hidden_dim, 2 * hidden_dim, 5, 1)
    p['convr2'] = _conv_init(keys[10], hidden_dim, 2 * hidden_dim, 5, 1)
    p['convq2'] = _conv_init(keys[11], hidden_dim, 2 * hidden_dim, 5, 1)
    # FlowHead
    p['fh1'] = _conv_init(keys[12], 64, hidden_dim, 3, 3)
    p['fh2'] = _conv_init(keys[13], 2 * num, 64, 3, 3)
    return p


# ----------------------------------------------------------------------------
# initial_layer and BasicUpdateBlock (activations fused into the GEMM epilogue)
# ----------------------------------------------------------------------------

def initial_layer(p, x):
    x = conv2d(x, p['init1']['w'], p['init1']['b'], (1, 1), activation="in_relu")
    x = conv2d(x, p['init2']['w'], p['init2']['b'], (1, 1), activation="in_relu")
    return x


def basic_update_block(p, hidden, corr, flow):
    # TODO(synk): BasicUpdateBlock source is not in the reference snippet; this is the
    # shape-consistent RAFT-style block (motion encoder + SepConvGRU + FlowHead) CoCosNet-v2 uses.
    cor = conv2d(corr, p['convc1']['w'], p['convc1']['b'], (0, 0), activation="relu")
    flo = conv2d(flow, p['convf1']['w'], p['convf1']['b'], (1, 1), activation="relu")
    flo = conv2d(flo, p['convf2']['w'], p['convf2']['b'], (1, 1), activation="relu")
    motion = conv2d(jnp.concatenate([cor, flo], axis=1),
                    p['conv']['w'], p['conv']['b'], (1, 1), activation="relu")
    motion = jnp.concatenate([motion, flow], axis=1)          # (B, hidden, H, W)

    hd = hidden.shape[1]

    def gru_pass(h, wz, bz, wr, br, wq, bq, pad):
        hx = jnp.concatenate([h, motion], axis=1)
        # z and r share the input hx: one fused Cout=2*hidden GEMM with sigmoid.
        zr = conv2d(hx,
                    jnp.concatenate([wz, wr], axis=0),
                    jnp.concatenate([bz, br], axis=0),
                    pad, activation="sigmoid")
        z, r = zr[:, :hd], zr[:, hd:]
        q = conv2d(jnp.concatenate([r * h, motion], axis=1), wq, bq, pad,
                   activation="tanh")
        return (1.0 - z) * h + z * q

    # horizontal GRU pass (1x5), then vertical GRU pass (5x1)
    hidden = gru_pass(hidden,
                      p['convz1']['w'], p['convz1']['b'],
                      p['convr1']['w'], p['convr1']['b'],
                      p['convq1']['w'], p['convq1']['b'], (0, 2))
    hidden = gru_pass(hidden,
                      p['convz2']['w'], p['convz2']['b'],
                      p['convr2']['w'], p['convr2']['b'],
                      p['convq2']['w'], p['convq2']['b'], (2, 0))

    delta = conv2d(conv2d(hidden, p['fh1']['w'], p['fh1']['b'], (1, 1),
                          activation="relu"),
                   p['fh2']['w'], p['fh2']['b'], (1, 1))
    dx, dy = jnp.split(delta, 2, axis=1)
    return hidden, dx, dy


# ----------------------------------------------------------------------------
# PatchMatchGRU.forward
# ----------------------------------------------------------------------------

def patch_match_gru_forward(params, left_features, right_features, right_input,
                            initial_offset_x, initial_offset_y,
                            temperature, iters):
    B, C, H, W = left_features.shape
    num = initial_offset_x.shape[1]
    HW = H * W

    hidden = initial_layer(
        params, jnp.concatenate([left_features, right_features], axis=1))

    left_flat = left_features.reshape(B, C, HW)
    right_flat = right_features.reshape(B, C, HW)
    # Pallas MXU kernel: the reference's match_cost[b,p,i] ==
    # corr_full[b, p, matching_inds[b,p,i]] (sum over channel / temperature).
    corr_full = correlation(left_flat, right_flat, temperature)   # bf16

    offset_x, offset_y = initial_offset_x, initial_offset_y
    matching_inds = None
    for _ in range(iters):
        offset_x, offset_y, corr = patch_match_once(corr_full, offset_x, offset_y)
        flow = jnp.concatenate([offset_x, offset_y], axis=1)      # (B, 2*num, H, W)
        corr_map = corr.reshape(B, -1, H, W)                      # (B, num, H, W)
        hidden, dx, dy = basic_update_block(params, hidden, corr_map, flow)
        offset_x = offset_x + dx
        offset_y = offset_y + dy
        inds = offset_to_inds(offset_x, offset_y)
        matching_inds = jnp.transpose(
            inds.reshape(B, num, HW), (0, 2, 1)).astype(jnp.int32)  # (B, HW, num)

    # final softmax + right_input gather + weighted reduction: one fused Pallas
    # kernel (no (B, NUM, Cr, HW) gather materialized in HBM).
    warp = warp_gather_reduce(corr_full, matching_inds, right_input)  # (B, Cr, HW)
    return matching_inds, warp


# ----------------------------------------------------------------------------
# main
# ----------------------------------------------------------------------------

if __name__ == "__main__":
    random.seed(0)  # PatchMatchOnce picks the propagation order with python random

    B, NEF, H, W = 2, 16, 16, 16          # opt.nef = 16
    HW = H * W
    NUM = 4                               # number of offset candidates
    HIDDEN = 32
    TEMPERATURE = 1.0                     # opt.temperature
    ITERS = 2                             # opt.iteration_count
    CR = 3                                # right_input channels

    key = jax.random.PRNGKey(0)
    k1, k2, k3, k4, kp = jax.random.split(key, 5)
    left_features = jax.random.normal(k1, (B, NEF, H, W), jnp.float32)
    right_features = jax.random.normal(k2, (B, NEF, H, W), jnp.float32)
    right_input = jax.random.normal(k3, (B, CR, HW), jnp.float32)
    init_inds = jax.random.randint(k4, (B, NUM, H, W), 0, HW).astype(jnp.float32)
    initial_offset_x, initial_offset_y = inds_to_offset(init_inds)

    params = init_params(kp, NEF, HIDDEN, NUM)

    matching_inds, warp = patch_match_gru_forward(
        params, left_features, right_features, right_input,
        initial_offset_x, initial_offset_y, TEMPERATURE, ITERS)
    (matching_inds, warp) = jax.block_until_ready((matching_inds, warp))

    assert matching_inds.shape == (B, HW, NUM)
    assert warp.shape == (B, CR, HW)
    assert bool(jnp.all(jnp.isfinite(warp)))
    print("KERNEL_OK")
</pallas_src>

<mosaic_0001>
module attributes {stable_mosaic.version = 11 : i64} {
  func.func @_shift_conv_kernel(%arg0: i32, %arg1: memref<9x32x32xbf16, #tpu.memory_space<vmem>>, %arg2: memref<32x1xf32, #tpu.memory_space<vmem>>, %arg3: memref<1x288xf32, #tpu.memory_space<vmem>>, %arg4: memref<1x32x384xbf16, #tpu.memory_space<vmem>>, %arg5: memref<1x32x288xf32, #tpu.memory_space<vmem>>) attributes {dimension_semantics = [#tpu.dimension_semantics<parallel>], iteration_bounds = array<i64: 2>, scalar_prefetch = 0 : i64, scratch_operands = 0 : i64, tpu.core_type = #tpu.core_type<tc>, window_params = [{pipeline_mode = #tpu.pipeline_mode<synchronous>, transform_indices = @transform_0, window_bounds = array<i64: 9, 32, 32>}, {pipeline_mode = #tpu.pipeline_mode<synchronous>, transform_indices = @transform_1, window_bounds = array<i64: 32, 1>}, {pipeline_mode = #tpu.pipeline_mode<synchronous>, transform_indices = @transform_2, window_bounds = array<i64: 1, 288>}, {transform_indices = @transform_3, window_bounds = array<i64: 1, 32, 384>}, {transform_indices = @transform_4, window_bounds = array<i64: 1, 32, 288>}]} {
    %c0 = arith.constant 0 : index
    %c0_0 = arith.constant 0 : index
    %c0_1 = arith.constant 0 : index
    %0 = vector.load %arg4[%c0, %c0_0, %c0_1] : memref<1x32x384xbf16, #tpu.memory_space<vmem>>, vector<1x32x384xbf16>
    %1 = vector.shape_cast %0 : vector<1x32x384xbf16> to vector<32x384xbf16>
    %2 = vector.extract_strided_slice %1 {offsets = [0, 0], sizes = [32, 288], strides = [1, 1]} : vector<32x384xbf16> to vector<32x288xbf16>
    %c0_2 = arith.constant 0 : index
    %c0_3 = arith.constant 0 : index
    %c0_4 = arith.constant 0 : index
    %3 = vector.load %arg1[%c0_2, %c0_3, %c0_4] : memref<9x32x32xbf16, #tpu.memory_space<vmem>>, vector<1x32x32xbf16>
    %4 = vector.shape_cast %3 : vector<1x32x32xbf16> to vector<32x32xbf16>
    %cst = arith.constant dense<0.000000e+00> : vector<32x288xf32>
    %5 = tpu.matmul %4, %2, %cst {dimension_numbers = #tpu.dot_dimension_numbers<[1], [0], [0], [1], [0, 0, 1, 1], [], []>} : vector<32x32xbf16>, vector<32x288xbf16>, vector<32x288xf32> -> vector<32x288xf32>
    %6 = vector.extract_strided_slice %1 {offsets = [0, 1], sizes = [32, 288], strides = [1, 1]} : vector<32x384xbf16> to vector<32x288xbf16>
    %c1 = arith.constant 1 : index
    %c0_5 = arith.constant 0 : index
    %c0_6 = arith.constant 0 : index
    %7 = vector.load %arg1[%c1, %c0_5, %c0_6] : memref<9x32x32xbf16, #tpu.memory_space<vmem>>, vector<1x32x32xbf16>
    %8 = vector.shape_cast %7 : vector<1x32x32xbf16> to vector<32x32xbf16>
    %cst_7 = arith.constant dense<0.000000e+00> : vector<32x288xf32>
    %9 = tpu.matmul %8, %6, %cst_7 {dimension_numbers = #tpu.dot_dimension_numbers<[1], [0], [0], [1], [0, 0, 1, 1], [], []>} : vector<32x32xbf16>, vector<32x288xbf16>, vector<32x288xf32> -> vector<32x288xf32>
    %10 = arith.addf %5, %9 : vector<32x288xf32>
    %11 = vector.extract_strided_slice %1 {offsets = [0, 2], sizes = [32, 288], strides = [1, 1]} : vector<32x384xbf16> to vector<32x288xbf16>
    %c2 = arith.constant 2 : index
    %c0_8 = arith.constant 0 : index
    %c0_9 = arith.constant 0 : index
    %12 = vector.load %arg1[%c2, %c0_8, %c0_9] : memref<9x32x32xbf16, #tpu.memory_space<vmem>>, vector<1x32x32xbf16>
    %13 = vector.shape_cast %12 : vector<1x32x32xbf16> to vector<32x32xbf16>
    %cst_10 = arith.constant dense<0.000000e+00> : vector<32x288xf32>
    %14 = tpu.matmul %13, %11, %cst_10 {dimension_numbers = #tpu.dot_dimension_numbers<[1], [0], [0], [1], [0, 0, 1, 1], [], []>} : vector<32x32xbf16>, vector<32x288xbf16>, vector<32x288xf32> -> vector<32x288xf32>
    %15 = arith.addf %10, %14 : vector<32x288xf32>
    %16 = vector.extract_strided_slice %1 {offsets = [0, 18], sizes = [32, 288], strides = [1, 1]} : vector<32x384xbf16> to vector<32x288xbf16>
    %c3 = arith.constant 3 : index
    %c0_11 = arith.constant 0 : index
    %c0_12 = arith.constant 0 : index
    %17 = vector.load %arg1[%c3, %c0_11, %c0_12] : memref<9x32x32xbf16, #tpu.memory_space<vmem>>, vector<1x32x32xbf16>
    %18 = vector.shape_cast %17 : vector<1x32x32xbf16> to vector<32x32xbf16>
    %cst_13 = arith.constant dense<0.000000e+00> : vector<32x288xf32>
    %19 = tpu.matmul %18, %16, %cst_13 {dimension_numbers = #tpu.dot_dimension_numbers<[1], [0], [0], [1], [0, 0, 1, 1], [], []>} : vector<32x32xbf16>, vector<32x288xbf16>, vector<32x288xf32> -> vector<32x288xf32>
    %20 = arith.addf %15, %19 : vector<32x288xf32>
    %21 = vector.extract_strided_slice %1 {offsets = [0, 19], sizes = [32, 288], strides = [1, 1]} : vector<32x384xbf16> to vector<32x288xbf16>
    %c4 = arith.constant 4 : index
    %c0_14 = arith.constant 0 : index
    %c0_15 = arith.constant 0 : index
    %22 = vector.load %arg1[%c4, %c0_14, %c0_15] : memref<9x32x32xbf16, #tpu.memory_space<vmem>>, vector<1x32x32xbf16>
    %23 = vector.shape_cast %22 : vector<1x32x32xbf16> to vector<32x32xbf16>
    %cst_16 = arith.constant dense<0.000000e+00> : vector<32x288xf32>
    %24 = tpu.matmul %23, %21, %cst_16 {dimension_numbers = #tpu.dot_dimension_numbers<[1], [0], [0], [1], [0, 0, 1, 1], [], []>} : vector<32x32xbf16>, vector<32x288xbf16>, vector<32x288xf32> -> vector<32x288xf32>
    %25 = arith.addf %20, %24 : vector<32x288xf32>
    %26 = vector.extract_strided_slice %1 {offsets = [0, 20], sizes = [32, 288], strides = [1, 1]} : vector<32x384xbf16> to vector<32x288xbf16>
    %c5 = arith.constant 5 : index
    %c0_17 = arith.constant 0 : index
    %c0_18 = arith.constant 0 : index
    %27 = vector.load %arg1[%c5, %c0_17, %c0_18] : memref<9x32x32xbf16, #tpu.memory_space<vmem>>, vector<1x32x32xbf16>
    %28 = vector.shape_cast %27 : vector<1x32x32xbf16> to vector<32x32xbf16>
    %cst_19 = arith.constant dense<0.000000e+00> : vector<32x288xf32>
    %29 = tpu.matmul %28, %26, %cst_19 {dimension_numbers = #tpu.dot_dimension_numbers<[1], [0], [0], [1], [0, 0, 1, 1], [], []>} : vector<32x32xbf16>, vector<32x288xbf16>, vector<32x288xf32> -> vector<32x288xf32>
    %30 = arith.addf %25, %29 : vector<32x288xf32>
    %31 = vector.extract_strided_slice %1 {offsets = [0, 36], sizes = [32, 288], strides = [1, 1]} : vector<32x384xbf16> to vector<32x288xbf16>
    %c6 = arith.constant 6 : index
    %c0_20 = arith.constant 0 : index
    %c0_21 = arith.constant 0 : index
    %32 = vector.load %arg1[%c6, %c0_20, %c0_21] : memref<9x32x32xbf16, #tpu.memory_space<vmem>>, vector<1x32x32xbf16>
    %33 = vector.shape_cast %32 : vector<1x32x32xbf16> to vector<32x32xbf16>
    %cst_22 = arith.constant dense<0.000000e+00> : vector<32x288xf32>
    %34 = tpu.matmul %33, %31, %cst_22 {dimension_numbers = #tpu.dot_dimension_numbers<[1], [0], [0], [1], [0, 0, 1, 1], [], []>} : vector<32x32xbf16>, vector<32x288xbf16>, vector<32x288xf32> -> vector<32x288xf32>
    %35 = arith.addf %30, %34 : vector<32x288xf32>
    %36 = vector.extract_strided_slice %1 {offsets = [0, 37], sizes = [32, 288], strides = [1, 1]} : vector<32x384xbf16> to vector<32x288xbf16>
    %c7 = arith.constant 7 : index
    %c0_23 = arith.constant 0 : index
    %c0_24 = arith.constant 0 : index
    %37 = vector.load %arg1[%c7, %c0_23, %c0_24] : memref<9x32x32xbf16, #tpu.memory_space<vmem>>, vector<1x32x32xbf16>
    %38 = vector.shape_cast %37 : vector<1x32x32xbf16> to vector<32x32xbf16>
    %cst_25 = arith.constant dense<0.000000e+00> : vector<32x288xf32>
    %39 = tpu.matmul %38, %36, %cst_25 {dimension_numbers = #tpu.dot_dimension_numbers<[1], [0], [0], [1], [0, 0, 1, 1], [], []>} : vector<32x32xbf16>, vector<32x288xbf16>, vector<32x288xf32> -> vector<32x288xf32>
    %40 = arith.addf %35, %39 : vector<32x288xf32>
    %41 = vector.extract_strided_slice %1 {offsets = [0, 38], sizes = [32, 288], strides = [1, 1]} : vector<32x384xbf16> to vector<32x288xbf16>
    %c8 = arith.constant 8 : index
    %c0_26 = arith.constant 0 : index
    %c0_27 = arith.constant 0 : index
    %42 = vector.load %arg1[%c8, %c0_26, %c0_27] : memref<9x32x32xbf16, #tpu.memory_space<vmem>>, vector<1x32x32xbf16>
    %43 = vector.shape_cast %42 : vector<1x32x32xbf16> to vector<32x32xbf16>
    %cst_28 = arith.constant dense<0.000000e+00> : vector<32x288xf32>
    %44 = tpu.matmul %43, %41, %cst_28 {dimension_numbers = #tpu.dot_dimension_numbers<[1], [0], [0], [1], [0, 0, 1, 1], [], []>} : vector<32x32xbf16>, vector<32x288xbf16>, vector<32x288xf32> -> vector<32x288xf32>
    %45 = arith.addf %40, %44 : vector<32x288xf32>
    %c0_29 = arith.constant 0 : index
    %c0_30 = arith.constant 0 : index
    %46 = vector.load %arg2[%c0_29, %c0_30] : memref<32x1xf32, #tpu.memory_space<vmem>>, vector<32x1xf32>
    %47 = vector.broadcast %46 : vector<32x1xf32> to vector<32x288xf32>
    %48 = arith.addf %45, %47 : vector<32x288xf32>
    %c0_31 = arith.constant 0 : index
    %c0_32 = arith.constant 0 : index
    %49 = vector.load %arg3[%c0_31, %c0_32] : memref<1x288xf32, #tpu.memory_space<vmem>>, vector<1x288xf32>
    %50 = vector.broadcast %49 : vector<1x288xf32> to vector<32x288xf32>
    %51 = arith.mulf %48, %50 : vector<32x288xf32>
    %cst_33 = arith.constant dense<0.000000e+00> : vector<32xf32>
    %52 = vector.multi_reduction <add>, %51, %cst_33 [1] : vector<32x288xf32> to vector<32xf32>
    %53 = vector.shape_cast %52 : vector<32xf32> to vector<32x1xf32>
    %cst_34 = arith.constant 3.906250e-03 : f32
    %54 = vector.broadcast %cst_34 : f32 to vector<32x1xf32>
    %55 = arith.mulf %53, %54 : vector<32x1xf32>
    %56 = vector.broadcast %55 : vector<32x1xf32> to vector<32x288xf32>
    %57 = arith.subf %48, %56 : vector<32x288xf32>
    %58 = vector.broadcast %49 : vector<1x288xf32> to vector<32x288xf32>
    %59 = arith.mulf %57, %58 : vector<32x288xf32>
    %60 = arith.mulf %59, %59 : vector<32x288xf32>
    %cst_35 = arith.constant dense<0.000000e+00> : vector<32xf32>
    %61 = vector.multi_reduction <add>, %60, %cst_35 [1] : vector<32x288xf32> to vector<32xf32>
    %62 = vector.shape_cast %61 : vector<32xf32> to vector<32x1xf32>
    %cst_36 = arith.constant 3.906250e-03 : f32
    %63 = vector.broadcast %cst_36 : f32 to vector<32x1xf32>
    %64 = arith.mulf %62, %63 : vector<32x1xf32>
    %65 = vector.broadcast %55 : vector<32x1xf32> to vector<32x288xf32>
    %66 = arith.subf %48, %65 : vector<32x288xf32>
    %cst_37 = arith.constant 9.99999974E-6 : f32
    %67 = vector.broadcast %cst_37 : f32 to vector<32x1xf32>
    %68 = arith.addf %64, %67 : vector<32x1xf32>
    %69 = math.rsqrt %68 : vector<32x1xf32>
    %70 = vector.broadcast %69 : vector<32x1xf32> to vector<32x288xf32>
    %71 = arith.mulf %66, %70 : vector<32x288xf32>
    %cst_38 = arith.constant 0.000000e+00 : f32
    %72 = vector.broadcast %cst_38 : f32 to vector<32x288xf32>
    %73 = arith.maximumf %71, %72 : vector<32x288xf32>
    %c0_39 = arith.constant 0 : index
    %c0_40 = arith.constant 0 : index
    %c0_41 = arith.constant 0 : index
    %74 = vector.load %arg5[%c0_39, %c0_40, %c0_41] : memref<1x32x288xf32, #tpu.memory_space<vmem>>, vector<1x32x288xf32>
    %75 = vector.shape_cast %74 : vector<1x32x288xf32> to vector<32x288xf32>
    %76 = vector.shape_cast %73 : vector<32x288xf32> to vector<1x32x288xf32>
    tpu.vector_store %arg5[%c0_39, %c0_40, %c0_41], %76 {strides = array<i32>} : memref<1x32x288xf32, #tpu.memory_space<vmem>>, vector<1x32x288xf32>,
    return
  }
  func.func @transform_0(%arg0: i32) -> (i32, i32, i32) {
    %c0_i32 = arith.constant 0 : i32
    %c0_i32_0 = arith.constant 0 : i32
    %c0_i32_1 = arith.constant 0 : i32
    %c0_i32_2 = arith.constant 0 : i32
    return %c0_i32, %c0_i32_0, %c0_i32_1 : i32, i32, i32
  }
  func.func @transform_1(%arg0: i32) -> (i32, i32) {
    %c0_i32 = arith.constant 0 : i32
    %c0_i32_0 = arith.constant 0 : i32
    %c0_i32_1 = arith.constant 0 : i32
    return %c0_i32, %c0_i32_0 : i32, i32
  }
  func.func @transform_2(%arg0: i32) -> (i32, i32) {
    %c0_i32 = arith.constant 0 : i32
    %c0_i32_0 = arith.constant 0 : i32
    %c0_i32_1 = arith.constant 0 : i32
    return %c0_i32, %c0_i32_0 : i32, i32
  }
  func.func @transform_3(%arg0: i32) -> (i32, i32, i32) {
    %c0_i32 = arith.constant 0 : i32
    %c0_i32_0 = arith.constant 0 : i32
    %c0_i32_1 = arith.constant 0 : i32
    return %arg0, %c0_i32, %c0_i32_0 : i32, i32, i32
  }
  func.func @transform_4(%arg0: i32) -> (i32, i32, i32) {
    %c0_i32 = arith.constant 0 : i32
    %c0_i32_0 = arith.constant 0 : i32
    %c0_i32_1 = arith.constant 0 : i32
    return %arg0, %c0_i32, %c0_i32_0 : i32, i32, i32
  }
}

</mosaic_0001>

<llo_original>
// kernel: tpu_custom_call.1
$region0: #{tpu_custom_call.1}
  #allocation0 [shape = 'u32[]', space=smem, size = 0x4, offset = 0x4, fixed_abs, tag = 'smem constant byte address 0x4 - core index']
  #allocation1 [shape = 'u32[144,128]{1,0:T(1,128)}', space=vmem, size = 0x12000, scoped, tag = 'internal scratch']
  %s0 = inlined_call_operand.hbm [shape: bf16[9,32,32], index: 0, kind: input, shape index: {}]
  %s1 = inlined_call_operand.vmem [shape: f32[32,1], index: 1, kind: input, shape index: {}]
  %s2 = inlined_call_operand.vmem [shape: f32[1,288], index: 2, kind: input, shape index: {}]
  %s3 = inlined_call_operand.hbm [shape: bf16[2,32,384], index: 3, kind: input, shape index: {}]
  %s4 = inlined_call_operand.hbm [shape: f32[2,32,288], index: 4, kind: output, shape index: {}]
  %s5 = sld [smem:[#allocation0]]
  $region57: #{tpu_custom_call.1} parent=0
    _
  %s7 = ssub.s32 1, %s5
  %s8 = scalar_select 0, %s7, %s5
  $region1: #{tpu_custom_call.1} parent=0
    #allocation2 [shape = 'u8[73728]{0}', space=vmem, size = 0x12000, scoped, tag = 'input window, operand 0, single buffered']
    #allocation3 [shape = 's32[2]{0}', space=sflag, size = 0x8, scoped, tag = 'scoped memory for tpu_custom_call.1']
    #allocation4 [shape = 's32[2]{0}', space=sflag, size = 0x8, scoped, tag = 'scoped memory for tpu_custom_call.1']
    #allocation5 [shape = 'u8[49152]{0}', space=vmem, size = 0xc000, scoped, tag = 'input window, operand 3']
    #allocation6 [shape = 's32[2]{0}', space=sflag, size = 0x8, scoped, tag = 'scoped memory for tpu_custom_call.1']
    #allocation7 [shape = 'u8[98304]{0}', space=vmem, size = 0x18000, scoped, tag = 'output window, operand 0']
    %9 = vsyncpa [#allocation3], 0
    %10 = vsyncpa [#allocation6], 0
    %s11 = scalar_lea.sflag [#allocation6], 1
    %12 = vsyncpa %s11, 0
    %13 = vsyncpa [#allocation4], 0
    %s14 = scalar_lea.sflag [#allocation4], 1
    %15 = vsyncpa %s14, 0
    loop: start=0, step=1, limit=4
    $region2: #{tpu_custom_call.1} parent=1 // loop_pre_header
      _
    $region3: #{tpu_custom_call.1} parent=1 // loop_header
      %s17 = sphi 0, %s21
      %p18 = scmp.ge.s32.totalorder %s17, 4
      %s25 = sphi 0, %s25
      %s27 = sphi 0, %s25
      %s28 = sphi 0, %s27
      %s42 = sphi 0, %s28
      %s46 = sphi 0, %s46
      %s48 = sphi 0, %s46
      %s49 = sphi 0, %s48
      %s63 = sphi 0, %s49
      %s67 = sphi 0, %s67
      %s69 = sphi 0, %s67
      %s70 = sphi 0, %s69
      %s84 = sphi 0, %s70
      %s90 = sphi 0, %s92
      %s93 = sphi 0, %s90
      %s94 = sphi 0, %s93
      %s110 = sphi 0, %s94
      %s116 = sphi 0, %s118
      %s119 = sphi 0, %s116
      %s120 = sphi 0, %s119
      %s136 = sphi 0, %s120
    $region4: #{tpu_custom_call.1} parent=1 // loop_header_branch
      %20 = sbr.rel (%p18) target = $region8
    $region5: #{tpu_custom_call.1} parent=1 // loop_body
      %s22 = ssub.s32 %s17, 1
      %s23 = ssub.s32 %s17, 2
      %s24 = sadd.s32 %s17, 1
      %s26 = sadd.s32 %s25, 1
      %p29 = scmp.eq.s32.totalorder %s17, 1
      %p30 = scmp.ne.s32.totalorder %s25, %s27
      %p31 = scmp.eq.s32.totalorder %s17, 0
      %p32 = por %p30, %p31
      %p33 = scmp.ne.s32.totalorder %s25, %s27
      %p34 = scmp.eq.s32.totalorder %s22, 1
      %p35 = por %p33, %p34
      %p36 = scmp.ne.s32.totalorder %s27, %s28
      %p37 = scmp.eq.s32.totalorder %s22, 0
      %p38 = por %p36, %p37
      %p39 = scmp.ne.s32.totalorder %s27, %s28
      %p40 = scmp.eq.s32.totalorder %s23, 1
      %p41 = por %p39, %p40
      %p43 = scmp.ne.s32.totalorder %s28, %s42
      %p44 = scmp.eq.s32.totalorder %s23, 0
      %p45 = por %p43, %p44
      %s47 = sadd.s32 %s46, 1
      %p50 = scmp.eq.s32.totalorder %s17, 1
      %p51 = scmp.ne.s32.totalorder %s46, %s48
      %p52 = scmp.eq.s32.totalorder %s17, 0
      %p53 = por %p51, %p52
      %p54 = scmp.ne.s32.totalorder %s46, %s48
      %p55 = scmp.eq.s32.totalorder %s22, 1
      %p56 = por %p54, %p55
      %p57 = scmp.ne.s32.totalorder %s48, %s49
      %p58 = scmp.eq.s32.totalorder %s22, 0
      %p59 = por %p57, %p58
      %p60 = scmp.ne.s32.totalorder %s48, %s49
      %p61 = scmp.eq.s32.totalorder %s23, 1
      %p62 = por %p60, %p61
      %p64 = scmp.ne.s32.totalorder %s49, %s63
      %p65 = scmp.eq.s32.totalorder %s23, 0
      %p66 = por %p64, %p65
      %s68 = sadd.s32 %s67, 1
      %p71 = scmp.eq.s32.totalorder %s17, 1
      %p72 = scmp.ne.s32.totalorder %s67, %s69
      %p73 = scmp.eq.s32.totalorder %s17, 0
      %p74 = por %p72, %p73
      %p75 = scmp.ne.s32.totalorder %s67, %s69
      %p76 = scmp.eq.s32.totalorder %s22, 1
      %p77 = por %p75, %p76
      %p78 = scmp.ne.s32.totalorder %s69, %s70
      %p79 = scmp.eq.s32.totalorder %s22, 0
      %p80 = por %p78, %p79
      %p81 = scmp.ne.s32.totalorder %s69, %s70
      %p82 = scmp.eq.s32.totalorder %s23, 1
      %p83 = por %p81, %p82
      %p85 = scmp.ne.s32.totalorder %s70, %s84
      %p86 = scmp.eq.s32.totalorder %s23, 0
      %p87 = por %p85, %p86
      %s88 = ssub.s32 %s17, %s24
      %p89 = scmp.eq.s32.totalorder %s88, 0
      %s91 = sadd.s32 %s90, 1
      %s92 = scalar_select %p89, %s90, %s91
      %p95 = pneg %p89
      %p96 = scmp.eq.s32.totalorder %s17, 1
      %p97 = por %p95, %p96
      %p98 = scmp.ne.s32.totalorder %s90, %s93
      %p99 = scmp.eq.s32.totalorder %s17, 0
      %p100 = por %p98, %p99
      %p101 = scmp.ne.s32.totalorder %s90, %s93
      %p102 = scmp.eq.s32.totalorder %s22, 1
      %p103 = por %p101, %p102
      %p104 = scmp.ne.s32.totalorder %s93, %s94
      %p105 = scmp.eq.s32.totalorder %s22, 0
      %p106 = por %p104, %p105
      %p107 = scmp.ne.s32.totalorder %s93, %s94
      %p108 = scmp.eq.s32.totalorder %s23, 1
      %p109 = por %p107, %p108
      %p111 = scmp.ne.s32.totalorder %s94, %s110
      %p112 = scmp.eq.s32.totalorder %s23, 0
      %p113 = por %p111, %p112
      %s114 = ssub.s32 %s17, %s24
      %p115 = scmp.eq.s32.totalorder %s114, 0
      %s117 = sadd.s32 %s116, 1
      %s118 = scalar_select %p115, %s116, %s117
      %p121 = pneg %p115
      %p122 = scmp.eq.s32.totalorder %s17, 1
      %p123 = por %p121, %p122
      %p124 = scmp.ne.s32.totalorder %s116, %s119
      %p125 = scmp.eq.s32.totalorder %s17, 0
      %p126 = por %p124, %p125
      %p127 = scmp.ne.s32.totalorder %s116, %s119
      %p128 = scmp.eq.s32.totalorder %s22, 1
      %p129 = por %p127, %p128
      %p130 = scmp.ne.s32.totalorder %s119, %s120
      %p131 = scmp.eq.s32.totalorder %s22, 0
      %p132 = por %p130, %p131
      %p133 = scmp.ne.s32.totalorder %s119, %s120
      %p134 = scmp.eq.s32.totalorder %s23, 1
      %p135 = por %p133, %p134
      %p137 = scmp.ne.s32.totalorder %s120, %s136
      %p138 = scmp.eq.s32.totalorder %s23, 0
      %p139 = por %p137, %p138
      %p140 = scmp.le.s32.totalorder 1, %s17
      %p141 = scmp.lt.s32.totalorder %s17, 3
      %p142 = pnand %p140, %p141
      %p143 = pneg %p142
      // Predicated region
      $region9: #{tpu_custom_call.1} parent=5 // pred_check
        _
      $region10: #{tpu_custom_call.1} parent=5 // pred_check_branch
        %145 = sbr.rel (%p142) target = $region12
      $region11: #{tpu_custom_call.1} parent=5 // pred_region
        %s146 = ssub.s32 %s17, 1
        // Predicated region
        $region13: #{tpu_custom_call.1} parent=11 // pred_check
          %p147 = pneg %p38
        $region14: #{tpu_custom_call.1} parent=11 // pred_check_branch
          %149 = sbr.rel (%p147) target = $region16
        $region15: #{tpu_custom_call.1} parent=11 // pred_region
          %s151 = ssub.s32 2304, 2304
          %152 = vsyncadd [#allocation3], %s151
          %s153 = sshll.u32 [#allocation2], 4
          %s154 = int_to_ptr.vmem [resolvable:$true] %s153
          %159 = dma.hbm_to_vmem [thread:$0]  %s0, 2304, %s154, [#allocation3], 64, 64, 4
        $region16: #{tpu_custom_call.1} parent=11 // pred_fallthru
          _
        // Predicated region
        $region17: #{tpu_custom_call.1} parent=11 // pred_check
          %p160 = pneg %p59
        $region18: #{tpu_custom_call.1} parent=11 // pred_check_branch
          %162 = sbr.rel (%p160) target = $region20
        $region19: #{tpu_custom_call.1} parent=11 // pred_region
          _
        $region20: #{tpu_custom_call.1} parent=11 // pred_fallthru
          _
        // Predicated region
        $region21: #{tpu_custom_call.1} parent=11 // pred_check
          %p163 = pneg %p80
        $region22: #{tpu_custom_call.1} parent=11 // pred_check_branch
          %165 = sbr.rel (%p163) target = $region24
        $region23: #{tpu_custom_call.1} parent=11 // pred_region
          _
        $region24: #{tpu_custom_call.1} parent=11 // pred_fallthru
          _
      $region12: #{tpu_custom_call.1} parent=5 // pred_fallthru
        _
      %p166 = scmp.lt.s32.totalorder %s17, 2
      // Predicated region
      $region25: #{tpu_custom_call.1} parent=5 // pred_check
        %p167 = pneg %p166
      $region26: #{tpu_custom_call.1} parent=5 // pred_check_branch
        %169 = sbr.rel (%p167) target = $region28
      $region27: #{tpu_custom_call.1} parent=5 // pred_region
        // Predicated region
        $region29: #{tpu_custom_call.1} parent=27 // pred_check
          %p170 = pneg %p100
        $region30: #{tpu_custom_call.1} parent=27 // pred_check_branch
          %172 = sbr.rel (%p170) target = $region32
        $region31: #{tpu_custom_call.1} parent=27 // pred_region
          %s173 = sand.u32 %s90, 1
          %s174 = scalar_lea.sflag [#allocation6], %s173
          %s175 = sand.u32 %s90, 1
          %s176 = smul.addr %s175, 48
          %s177 = scalar_lea.vmem [#allocation5], %s176
          %s179 = ssub.s32 768, 768
          %180 = vsyncadd %s174, %s179
          %s181 = smul.addr %s17, 12
          %s182 = smul.addr %s181, 64
          %s183 = scalar_lea.hbm %s3, %s182
          %s184 = sshll.u32 %s177, 4
          %s185 = int_to_ptr.vmem [resolvable:$true] %s184
          %190 = dma.hbm_to_vmem [thread:$0]  %s183, 768, %s185, %s174, 192, 192, 12
        $region32: #{tpu_custom_call.1} parent=27 // pred_fallthru
          _
      $region28: #{tpu_custom_call.1} parent=5 // pred_fallthru
        _
      %p191 = scmp.le.s32.totalorder 1, %s17
      %p192 = scmp.lt.s32.totalorder %s17, 3
      %p193 = pnand %p191, %p192
      %p194 = pneg %p193
      // Predicated region
      $region33: #{tpu_custom_call.1} parent=5 // pred_check
        _
      $region34: #{tpu_custom_call.1} parent=5 // pred_check_branch
        %196 = sbr.rel (%p193) target = $region36
      $region35: #{tpu_custom_call.1} parent=5 // pred_region
        %s197 = ssub.s32 %s17, 1
        // Predicated region
        $region37: #{tpu_custom_call.1} parent=35 // pred_check
          %p198 = pneg %p38
        $region38: #{tpu_custom_call.1} parent=35 // pred_check_branch
          %200 = sbr.rel (%p198) target = $region40
        $region39: #{tpu_custom_call.1} parent=35 // pred_region
          %201 = dma.done [#allocation3], 2304
        $region40: #{tpu_custom_call.1} parent=35 // pred_fallthru
          _
        %s202 = sand.u32 %s93, 1
        %s203 = scalar_lea.sflag [#allocation6], %s202
        %s204 = sand.u32 %s93, 1
        %s205 = smul.addr %s204, 48
        %s206 = scalar_lea.vmem [#allocation5], %s205
        // Predicated region
        $region41: #{tpu_custom_call.1} parent=35 // pred_check
          %p207 = pneg %p106
        $region42: #{tpu_custom_call.1} parent=35 // pred_check_branch
          %209 = sbr.rel (%p207) target = $region44
        $region43: #{tpu_custom_call.1} parent=35 // pred_region
          %210 = dma.done %s203, 768
        $region44: #{tpu_custom_call.1} parent=35 // pred_fallthru
          _
        %p211 = pneg %p38
        %p212 = pneg %p35
        %p213 = pneg %p59
        %p214 = pneg %p56
        %p215 = pneg %p80
        %p216 = pneg %p77
        %s217 = sand.u32 %s93, 1
        %s218 = scalar_lea.sflag [#allocation6], %s217
        %s219 = sand.u32 %s93, 1
        %s220 = smul.addr %s219, 48
        %s221 = scalar_lea.vmem [#allocation5], %s220
        %p222 = pneg %p106
        %p223 = pneg %p103
        %p224 = pneg %p132
        %p225 = pneg %p129
        %s226 = sand.u32 %s119, 1
        %s227 = scalar_lea.sflag [#allocation4], %s226
        %s228 = sand.u32 %s119, 1
        %s229 = smul.addr %s228, 96
        %s230 = scalar_lea.vmem [#allocation7], %s229
        %v232 = vld [vmem:[%s206] sm:$0xff]
        %v233 = vld [vmem:[%s206 + $0x8] sm:$0xf]
        %v234 = vld [vmem:[%s206 + $0xc] sm:$0xff]
        %v235 = vld [vmem:[%s206 + $0x14] sm:$0xf]
        %v236 = vld [vmem:[%s206 + $0x18] sm:$0xff]
        %v237 = vld [vmem:[%s206 + $0x20] sm:$0xf]
        %v238 = vld [vmem:[%s206 + $0x24] sm:$0xff]
        %v239 = vld [vmem:[%s206 + $0x2c] sm:$0xf]
        %v240 = vld [vmem:[#allocation2] sm:$0xf]
        %v241 = vld [vmem:[#allocation2 + $0x4] sm:$0xf]
        %v242 = vld [vmem:[#allocation2 + $0x8] sm:$0xf]
        %v243 = vld [vmem:[#allocation2 + $0xc] sm:$0xf]
        %s244 = scalar_lea.vmem [#allocation2], 16
        %v245 = vld [vmem:[%s244] sm:$0xf]
        %v246 = vld [vmem:[%s244 + $0x4] sm:$0xf]
        %v247 = vld [vmem:[%s244 + $0x8] sm:$0xf]
        %v248 = vld [vmem:[%s244 + $0xc] sm:$0xf]
        %v253 = vunpack.c.l.b16 %v245
        %v254 = vunpack.c.l.b16 %v246
        %v255 = vunpack.c.l.b16 %v247
        %v256 = vunpack.c.l.b16 %v248
        %v257 = vpack.c.b16 %v254, %v253
        %v258 = vpack.c.b16 %v256, %v255
        %v267 = vunpack.c.l.b16 %v232
        %v268 = vunpack.c.h.b16 %v232
        %v269 = vunpack.c.l.b16 %v233
        %v270 = vunpack.c.l.b16 %v234
        %v271 = vunpack.c.h.b16 %v234
        %v272 = vunpack.c.l.b16 %v235
        %v273 = vunpack.c.l.b16 %v236
        %v274 = vunpack.c.h.b16 %v236
        %v275 = vunpack.c.l.b16 %v237
        %v276 = vunpack.c.l.b16 %v238
        %v277 = vunpack.c.h.b16 %v238
        %v278 = vunpack.c.l.b16 %v239
        %v279 = vpack.c.b16 %v270, %v267
        %v280 = vpack.c.b16 %v271, %v268
        %v281 = vpack.c.b16 %v272, %v269
        %v282 = vpack.c.b16 %v276, %v273
        %v283 = vpack.c.b16 %v277, %v274
        %v284 = vpack.c.b16 %v278, %v275
        %285 = vrot.lane.b32.xlu0 %v279, 127
        %v286 = vpop.permute.xlu0 %285
        %287 = vrot.lane.b32.xlu0 %v280, 127
        %v288 = vpop.permute.xlu0 %287
        %289 = vrot.lane.b32.xlu0 %v281, 127
        %v290 = vpop.permute.xlu0 %289
        %291 = vrot.lane.b32.xlu0 %v282, 127
        %v292 = vpop.permute.xlu0 %291
        %293 = vrot.lane.b32.xlu0 %v283, 127
        %v294 = vpop.permute.xlu0 %293
        %295 = vrot.lane.b32.xlu0 %v284, 127
        %v296 = vpop.permute.xlu0 %295
        %vm297 = vcmask 1039360
        %v298 = vsel %vm297, %v286, %v288
        %v299 = vsel %vm297, %v288, %v290
        %v300 = vsel %vm297, %v292, %v294
        %v301 = vsel %vm297, %v294, %v296
        %vm308 = vcmask 261120
        %v310 = vsel %vm308, %v257, 0
        %v313 = vsel %vm308, %v258, 0
        %315 = vmatprep.subr.bf16.mxu0 %v299
        %316 = vmatpush1.bf16.msra.mxu0 %v298
        %317 = vmatprep.subr.bf16.mxu0 %v301
        %318 = vmatpush1.bf16.msra.mxu0 %v300
        %319 = vmatprep.subr.bf16.mxu0 0
        %320 = vmatpush1.bf16.msra.mxu0 0
        %321 = vmatprep.subr.bf16.mxu0 0
        %322 = vmatpush1.bf16.msra.mxu0 0
        %323 = vmatprep.subr.bf16.mxu0 0
        %324 = vmatpush1.bf16.msra.mxu0 0
        %325 = vmatprep.subr.bf16.mxu0 0
        %326 = vmatpush1.bf16.msra.mxu0 0
        %327 = vmatprep.subr.bf16.mxu0 0
        %328 = vmatpush1.bf16.msra.mxu0 0
        %329 = vmatprep.subr.bf16.mxu0 0
        %330 = vmatpush1.bf16.msra.mxu0 0
        %331 = vmatprep.subr.bf16.mxu0 0
        %332 = vmatpush1.bf16.msra.mxu0 0
        %333 = vmatprep.subr.bf16.mxu0 0
        %334 = vmatpush1.bf16.msra.mxu0 0
        %335 = vmatprep.subr.bf16.mxu0 0
        %336 = vmatpush1.bf16.msra.mxu0 0
        %337 = vmatprep.subr.bf16.mxu0 0
        %338 = vmatpush1.bf16.msra.mxu0 0
        %339 = vmatprep.subr.bf16.mxu0 0
        %340 = vmatpush1.bf16.msra.mxu0 0
        %341 = vmatprep.subr.bf16.mxu0 0
        %342 = vmatpush1.bf16.msra.mxu0 0
        %343 = vmatprep.subr.bf16.mxu0 0
        %344 = vmatpush1.bf16.msra.mxu0 0
        %345 = vmatprep.subr.bf16.mxu0 0
        %346 = vmatpush1.bf16.msra.mxu0 0
        %347 = vmatprep.mubr.bf16.mxu0 0
        %348 = vmatmul.mubr.bf16.gmra.mrb[0].mxu0 %v310
        %v349 = vpop.f32.mrb[0].mxu0
        %v350 = vadd.f32 0.0, %v349
        %v351 = vpop.f32.mrb[0].mxu0
        %v352 = vadd.f32 0.0, %v351
        %v353 = vpop.f32.mrb[0].mxu0
        %v354 = vadd.f32 0.0, %v353
        %v355 = vpop.f32.mrb[0].mxu0
        %v356 = vadd.f32 0.0, %v355
        %357 = vmatprep.mubr.bf16.mxu0 0
        %358 = vmatmul.mubr.bf16.gmra.mrb[0].mxu0 %v313
        %v359 = vpop.f32.mrb[0].mxu0
        %v360 = vadd.f32 0.0, %v359
        %v361 = vpop.f32.mrb[0].mxu0
        %v362 = vadd.f32 0.0, %v361
        %v363 = vpop.f32.mrb[0].mxu0
        %v364 = vadd.f32 0.0, %v363
        %v365 = vpop.f32.mrb[0].mxu0
        %v366 = vadd.f32 0.0, %v365
        %367 = vdwg.mxu0
        %368 = vmatprep.subr.bf16.mxu0 0
        %369 = vmatpush1.bf16.msra.mxu0 %v290
        %370 = vmatprep.subr.bf16.mxu0 0
        %371 = vmatpush1.bf16.msra.mxu0 %v296
        %372 = vmatprep.subr.bf16.mxu0 0
        %373 = vmatpush1.bf16.msra.mxu0 0
        %374 = vmatprep.subr.bf16.mxu0 0
        %375 = vmatpush1.bf16.msra.mxu0 0
        %376 = vmatprep.subr.bf16.mxu0 0
        %377 = vmatpush1.bf16.msra.mxu0 0
        %378 = vmatprep.subr.bf16.mxu0 0
        %379 = vmatpush1.bf16.msra.mxu0 0
        %380 = vmatprep.subr.bf16.mxu0 0
        %381 = vmatpush1.bf16.msra.mxu0 0
        %382 = vmatprep.subr.bf16.mxu0 0
        %383 = vmatpush1.bf16.msra.mxu0 0
        %384 = vmatprep.subr.bf16.mxu0 0
        %385 = vmatpush1.bf16.msra.mxu0 0
        %386 = vmatprep.subr.bf16.mxu0 0
        %387 = vmatpush1.bf16.msra.mxu0 0
        %388 = vmatprep.subr.bf16.mxu0 0
        %389 = vmatpush1.bf16.msra.mxu0 0
        %390 = vmatprep.subr.bf16.mxu0 0
        %391 = vmatpush1.bf16.msra.mxu0 0
        %392 = vmatprep.subr.bf16.mxu0 0
        %393 = vmatpush1.bf16.msra.mxu0 0
        %394 = vmatprep.subr.bf16.mxu0 0
        %395 = vmatpush1.bf16.msra.mxu0 0
        %396 = vmatprep.subr.bf16.mxu0 0
        %397 = vmatpush1.bf16.msra.mxu0 0
        %398 = vmatprep.subr.bf16.mxu0 0
        %399 = vmatpush1.bf16.msra.mxu0 0
        %400 = vmatprep.mubr.bf16.mxu0 0
        %401 = vmatmul.mubr.bf16.gmra.mrb[0].mxu0 %v310
        %v402 = vpop.f32.mrb[0].mxu0
        %v403 = vadd.f32 0.0, %v402
        %v404 = vpop.f32.mrb[0].mxu0
        %v405 = vpop.f32.mrb[0].mxu0
        %v406 = vadd.f32 0.0, %v405
        %v407 = vpop.f32.mrb[0].mxu0
        %408 = vmatprep.mubr.bf16.mxu0 0
        %409 = vmatmul.mubr.bf16.gmra.mrb[0].mxu0 %v313
        %v410 = vpop.f32.mrb[0].mxu0
        %v411 = vadd.f32 0.0, %v410
        %v412 = vpop.f32.mrb[0].mxu0
        %v413 = vpop.f32.mrb[0].mxu0
        %v414 = vadd.f32 0.0, %v413
        %v415 = vpop.f32.mrb[0].mxu0
        %416 = vdwg.mxu0
        %v421 = vunpack.c.l.b16 %v240
        %v422 = vunpack.c.l.b16 %v241
        %v423 = vunpack.c.l.b16 %v242
        %v424 = vunpack.c.l.b16 %v243
        %v425 = vpack.c.b16 %v422, %v421
        %v426 = vpack.c.b16 %v424, %v423
        %v434 = vsel %vm308, %v425, 0
        %v437 = vsel %vm308, %v426, 0
        %439 = vmatprep.subr.bf16.mxu0 %v280
        %440 = vmatpush1.bf16.msra.mxu0 %v279
        %441 = vmatprep.subr.bf16.mxu0 %v283
        %442 = vmatpush1.bf16.msra.mxu0 %v282
        %443 = vmatprep.subr.bf16.mxu0 0
        %444 = vmatpush1.bf16.msra.mxu0 0
        %445 = vmatprep.subr.bf16.mxu0 0
        %446 = vmatpush1.bf16.msra.mxu0 0
        %447 = vmatprep.subr.bf16.mxu0 0
        %448 = vmatpush1.bf16.msra.mxu0 0
        %449 = vmatprep.subr.bf16.mxu0 0
        %450 = vmatpush1.bf16.msra.mxu0 0
        %451 = vmatprep.subr.bf16.mxu0 0
        %452 = vmatpush1.bf16.msra.mxu0 0
        %453 = vmatprep.subr.bf16.mxu0 0
        %454 = vmatpush1.bf16.msra.mxu0 0
        %455 = vmatprep.subr.bf16.mxu0 0
        %456 = vmatpush1.bf16.msra.mxu0 0
        %457 = vmatprep.subr.bf16.mxu0 0
        %458 = vmatpush1.bf16.msra.mxu0 0
        %459 = vmatprep.subr.bf16.mxu0 0
        %460 = vmatpush1.bf16.msra.mxu0 0
        %461 = vmatprep.subr.bf16.mxu0 0
        %462 = vmatpush1.bf16.msra.mxu0 0
        %463 = vmatprep.subr.bf16.mxu0 0
        %464 = vmatpush1.bf16.msra.mxu0 0
        %465 = vmatprep.subr.bf16.mxu0 0
        %466 = vmatpush1.bf16.msra.mxu0 0
        %467 = vmatprep.subr.bf16.mxu0 0
        %468 = vmatpush1.bf16.msra.mxu0 0
        %469 = vmatprep.subr.bf16.mxu0 0
        %470 = vmatpush1.bf16.msra.mxu0 0
        %471 = vmatprep.mubr.bf16.mxu0 0
        %472 = vmatmul.mubr.bf16.gmra.mrb[0].mxu0 %v434
        %v473 = vpop.f32.mrb[0].mxu0
        %v474 = vadd.f32 %v350, %v473
        %v475 = vpop.f32.mrb[0].mxu0
        %v476 = vadd.f32 %v352, %v475
        %v477 = vpop.f32.mrb[0].mxu0
        %v478 = vadd.f32 %v354, %v477
        %v479 = vpop.f32.mrb[0].mxu0
        %v480 = vadd.f32 %v356, %v479
        %481 = vmatprep.mubr.bf16.mxu0 0
        %482 = vmatmul.mubr.bf16.gmra.mrb[0].mxu0 %v437
        %v483 = vpop.f32.mrb[0].mxu0
        %v484 = vadd.f32 %v360, %v483
        %v485 = vpop.f32.mrb[0].mxu0
        %v486 = vadd.f32 %v362, %v485
        %v487 = vpop.f32.mrb[0].mxu0
        %v488 = vadd.f32 %v364, %v487
        %v489 = vpop.f32.mrb[0].mxu0
        %v490 = vadd.f32 %v366, %v489
        %491 = vdwg.mxu0
        %492 = vmatprep.subr.bf16.mxu0 0
        %493 = vmatpush1.bf16.msra.mxu0 %v281
        %494 = vmatprep.subr.bf16.mxu0 0
        %495 = vmatpush1.bf16.msra.mxu0 %v284
        %496 = vmatprep.subr.bf16.mxu0 0
        %497 = vmatpush1.bf16.msra.mxu0 0
        %498 = vmatprep.subr.bf16.mxu0 0
        %499 = vmatpush1.bf16.msra.mxu0 0
        %500 = vmatprep.subr.bf16.mxu0 0
        %501 = vmatpush1.bf16.msra.mxu0 0
        %502 = vmatprep.subr.bf16.mxu0 0
        %503 = vmatpush1.bf16.msra.mxu0 0
        %504 = vmatprep.subr.bf16.mxu0 0
        %505 = vmatpush1.bf16.msra.mxu0 0
        %506 = vmatprep.subr.bf16.mxu0 0
        %507 = vmatpush1.bf16.msra.mxu0 0
        %508 = vmatprep.subr.bf16.mxu0 0
        %509 = vmatpush1.bf16.msra.mxu0 0
        %510 = vmatprep.subr.bf16.mxu0 0
        %511 = vmatpush1.bf16.msra.mxu0 0
        %512 = vmatprep.subr.bf16.mxu0 0
        %513 = vmatpush1.bf16.msra.mxu0 0
        %514 = vmatprep.subr.bf16.mxu0 0
        %515 = vmatpush1.bf16.msra.mxu0 0
        %516 = vmatprep.subr.bf16.mxu0 0
        %517 = vmatpush1.bf16.msra.mxu0 0
        %518 = vmatprep.subr.bf16.mxu0 0
        %519 = vmatpush1.bf16.msra.mxu0 0
        %520 = vmatprep.subr.bf16.mxu0 0
        %521 = vmatpush1.bf16.msra.mxu0 0
        %522 = vmatprep.subr.bf16.mxu0 0
        %523 = vmatpush1.bf16.msra.mxu0 0
        %524 = vmatprep.mubr.bf16.mxu0 0
        %525 = vmatmul.mubr.bf16.gmra.mrb[0].mxu0 %v434
        %v526 = vpop.f32.mrb[0].mxu0
        %v527 = vadd.f32 %v403, %v526
        %v528 = vpop.f32.mrb[0].mxu0
        %v529 = vpop.f32.mrb[0].mxu0
        %v530 = vadd.f32 %v406, %v529
        %v531 = vpop.f32.mrb[0].mxu0
        %532 = vmatprep.mubr.bf16.mxu0 0
        %533 = vmatmul.mubr.bf16.gmra.mrb[0].mxu0 %v437
        %v534 = vpop.f32.mrb[0].mxu0
        %v535 = vadd.f32 %v411, %v534
        %v536 = vpop.f32.mrb[0].mxu0
        %v537 = vpop.f32.mrb[0].mxu0
        %v538 = vadd.f32 %v414, %v537
        %v539 = vpop.f32.mrb[0].mxu0
        %540 = vdwg.mxu0
        %s541 = scalar_lea.vmem [#allocation2], 32
        %v542 = vld [vmem:[%s541] sm:$0xf]
        %v543 = vld [vmem:[%s541 + $0x4] sm:$0xf]
        %v544 = vld [vmem:[%s541 + $0x8] sm:$0xf]
        %v545 = vld [vmem:[%s541 + $0xc] sm:$0xf]
        %v550 = vunpack.c.l.b16 %v542
        %v551 = vunpack.c.l.b16 %v543
        %v552 = vunpack.c.l.b16 %v544
        %v553 = vunpack.c.l.b16 %v545
        %v554 = vpack.c.b16 %v551, %v550
        %v555 = vpack.c.b16 %v553, %v552
        %556 = vrot.lane.b32.xlu0 %v279, 126
        %v557 = vpop.permute.xlu0 %556
        %558 = vrot.lane.b32.xlu0 %v280, 126
        %v559 = vpop.permute.xlu0 %558
        %560 = vrot.lane.b32.xlu0 %v281, 126
        %v561 = vpop.permute.xlu0 %560
        %562 = vrot.lane.b32.xlu0 %v282, 126
        %v563 = vpop.permute.xlu0 %562
        %564 = vrot.lane.b32.xlu0 %v283, 126
        %v565 = vpop.permute.xlu0 %564
        %566 = vrot.lane.b32.xlu0 %v284, 126
        %v567 = vpop.permute.xlu0 %566
        %vm568 = vcmask 1031168
        %v569 = vsel %vm568, %v557, %v559
        %v570 = vsel %vm568, %v559, %v561
        %v571 = vsel %vm568, %v563, %v565
        %v572 = vsel %vm568, %v565, %v567
        %v580 = vsel %vm308, %v554, 0
        %v583 = vsel %vm308, %v555, 0
        %585 = vmatprep.subr.bf16.mxu0 %v570
        %586 = vmatpush1.bf16.msra.mxu0 %v569
        %587 = vmatprep.subr.bf16.mxu0 %v572
        %588 = vmatpush1.bf16.msra.mxu0 %v571
        %589 = vmatprep.subr.bf16.mxu0 0
        %590 = vmatpush1.bf16.msra.mxu0 0
        %591 = vmatprep.subr.bf16.mxu0 0
        %592 = vmatpush1.bf16.msra.mxu0 0
        %593 = vmatprep.subr.bf16.mxu0 0
        %594 = vmatpush1.bf16.msra.mxu0 0
        %595 = vmatprep.subr.bf16.mxu0 0
        %596 = vmatpush1.bf16.msra.mxu0 0
        %597 = vmatprep.subr.bf16.mxu0 0
        %598 = vmatpush1.bf16.msra.mxu0 0
        %599 = vmatprep.subr.bf16.mxu0 0
        %600 = vmatpush1.bf16.msra.mxu0 0
        %601 = vmatprep.subr.bf16.mxu0 0
        %602 = vmatpush1.bf16.msra.mxu0 0
        %603 = vmatprep.subr.bf16.mxu0 0
        %604 = vmatpush1.bf16.msra.mxu0 0
        %605 = vmatprep.subr.bf16.mxu0 0
        %606 = vmatpush1.bf16.msra.mxu0 0
        %607 = vmatprep.subr.bf16.mxu0 0
        %608 = vmatpush1.bf16.msra.mxu0 0
        %609 = vmatprep.subr.bf16.mxu0 0
        %610 = vmatpush1.bf16.msra.mxu0 0
        %611 = vmatprep.subr.bf16.mxu0 0
        %612 = vmatpush1.bf16.msra.mxu0 0
        %613 = vmatprep.subr.bf16.mxu0 0
        %614 = vmatpush1.bf16.msra.mxu0 0
        %615 = vmatprep.subr.bf16.mxu0 0
        %616 = vmatpush1.bf16.msra.mxu0 0
        %617 = vmatprep.mubr.bf16.mxu0 0
        %618 = vmatmul.mubr.bf16.gmra.mrb[0].mxu0 %v580
        %v619 = vpop.f32.mrb[0].mxu0
        %v620 = vadd.f32 0.0, %v619
        %v621 = vpop.f32.mrb[0].mxu0
        %v622 = vadd.f32 0.0, %v621
        %v623 = vpop.f32.mrb[0].mxu0
        %v624 = vadd.f32 0.0, %v623
        %v625 = vpop.f32.mrb[0].mxu0
        %v626 = vadd.f32 0.0, %v625
        %627 = vmatprep.mubr.bf16.mxu0 0
        %628 = vmatmul.mubr.bf16.gmra.mrb[0].mxu0 %v583
        %v629 = vpop.f32.mrb[0].mxu0
        %v630 = vadd.f32 0.0, %v629
        %v631 = vpop.f32.mrb[0].mxu0
        %v632 = vadd.f32 0.0, %v631
        %v633 = vpop.f32.mrb[0].mxu0
        %v634 = vadd.f32 0.0, %v633
        %v635 = vpop.f32.mrb[0].mxu0
        %v636 = vadd.f32 0.0, %v635
        %637 = vdwg.mxu0
        %638 = vmatprep.subr.bf16.mxu0 0
        %639 = vmatpush1.bf16.msra.mxu0 %v561
        %640 = vmatprep.subr.bf16.mxu0 0
        %641 = vmatpush1.bf16.msra.mxu0 %v567
        %642 = vmatprep.subr.bf16.mxu0 0
        %643 = vmatpush1.bf16.msra.mxu0 0
        %644 = vmatprep.subr.bf16.mxu0 0
        %645 = vmatpush1.bf16.msra.mxu0 0
        %646 = vmatprep.subr.bf16.mxu0 0
        %647 = vmatpush1.bf16.msra.mxu0 0
        %648 = vmatprep.subr.bf16.mxu0 0
        %649 = vmatpush1.bf16.msra.mxu0 0
        %650 = vmatprep.subr.bf16.mxu0 0
        %651 = vmatpush1.bf16.msra.mxu0 0
        %652 = vmatprep.subr.bf16.mxu0 0
        %653 = vmatpush1.bf16.msra.mxu0 0
        %654 = vmatprep.subr.bf16.mxu0 0
        %655 = vmatpush1.bf16.msra.mxu0 0
        %656 = vmatprep.subr.bf16.mxu0 0
        %657 = vmatpush1.bf16.msra.mxu0 0
        %658 = vmatprep.subr.bf16.mxu0 0
        %659 = vmatpush1.bf16.msra.mxu0 0
        %660 = vmatprep.subr.bf16.mxu0 0
        %661 = vmatpush1.bf16.msra.mxu0 0
        %662 = vmatprep.subr.bf16.mxu0 0
        %663 = vmatpush1.bf16.msra.mxu0 0
        %664 = vmatprep.subr.bf16.mxu0 0
        %665 = vmatpush1.bf16.msra.mxu0 0
        %666 = vmatprep.subr.bf16.mxu0 0
        %667 = vmatpush1.bf16.msra.mxu0 0
        %668 = vmatprep.subr.bf16.mxu0 0
        %669 = vmatpush1.bf16.msra.mxu0 0
        %670 = vmatprep.mubr.bf16.mxu0 0
        %671 = vmatmul.mubr.bf16.gmra.mrb[0].mxu0 %v580
        %v672 = vpop.f32.mrb[0].mxu0
        %v673 = vadd.f32 0.0, %v672
        %v674 = vpop.f32.mrb[0].mxu0
        %v675 = vpop.f32.mrb[0].mxu0
        %v676 = vadd.f32 0.0, %v675
        %v677 = vpop.f32.mrb[0].mxu0
        %678 = vmatprep.mubr.bf16.mxu0 0
        %679 = vmatmul.mubr.bf16.gmra.mrb[0].mxu0 %v583
        %v680 = vpop.f32.mrb[0].mxu0
        %v681 = vadd.f32 0.0, %v680
        %v682 = vpop.f32.mrb[0].mxu0
        %v683 = vpop.f32.mrb[0].mxu0
        %v684 = vadd.f32 0.0, %v683
        %v685 = vpop.f32.mrb[0].mxu0
        %686 = vdwg.mxu0
        %v687 = vadd.f32 %v474, %v620
        %v688 = vadd.f32 %v476, %v622
        %v689 = vadd.f32 %v527, %v673
        %v690 = vadd.f32 %v478, %v624
        %v691 = vadd.f32 %v480, %v626
        %v692 = vadd.f32 %v530, %v676
        %v693 = vadd.f32 %v484, %v630
        %v694 = vadd.f32 %v486, %v632
        %v695 = vadd.f32 %v535, %v681
        %v696 = vadd.f32 %v488, %v634
        %v697 = vadd.f32 %v490, %v636
        %v698 = vadd.f32 %v538, %v684
        %s699 = scalar_lea.vmem [#allocation2], 48
        %v700 = vld [vmem:[%s699] sm:$0xf]
        %v701 = vld [vmem:[%s699 + $0x4] sm:$0xf]
        %v702 = vld [vmem:[%s699 + $0x8] sm:$0xf]
        %v703 = vld [vmem:[%s699 + $0xc] sm:$0xf]
        %v708 = vunpack.c.l.b16 %v700
        %v709 = vunpack.c.l.b16 %v701
        %v710 = vunpack.c.l.b16 %v702
        %v711 = vunpack.c.l.b16 %v703
        %v712 = vpack.c.b16 %v709, %v708
        %v713 = vpack.c.b16 %v711, %v710
        %714 = vrot.lane.b32.xlu0 %v279, 110
        %v715 = vpop.permute.xlu0 %714
        %716 = vrot.lane.b32.xlu0 %v280, 110
        %v717 = vpop.permute.xlu0 %716
        %718 = vrot.lane.b32.xlu0 %v281, 110
        %v719 = vpop.permute.xlu0 %718
        %720 = vrot.lane.b32.xlu0 %v282, 110
        %v721 = vpop.permute.xlu0 %720
        %722 = vrot.lane.b32.xlu0 %v283, 110
        %v723 = vpop.permute.xlu0 %722
        %724 = vrot.lane.b32.xlu0 %v284, 110
        %v725 = vpop.permute.xlu0 %724
        %vm726 = vcmask 900096
        %v727 = vsel %vm726, %v715, %v717
        %v728 = vsel %vm726, %v717, %v719
        %v729 = vsel %vm726, %v721, %v723
        %v730 = vsel %vm726, %v723, %v725
        %v738 = vsel %vm308, %v712, 0
        %v741 = vsel %vm308, %v713, 0
        %743 = vmatprep.subr.bf16.mxu0 %v728
        %744 = vmatpush1.bf16.msra.mxu0 %v727
        %745 = vmatprep.subr.bf16.mxu0 %v730
        %746 = vmatpush1.bf16.msra.mxu0 %v729
        %747 = vmatprep.subr.bf16.mxu0 0
        %748 = vmatpush1.bf16.msra.mxu0 0
        %749 = vmatprep.subr.bf16.mxu0 0
        %750 = vmatpush1.bf16.msra.mxu0 0
        %751 = vmatprep.subr.bf16.mxu0 0
        %752 = vmatpush1.bf16.msra.mxu0 0
        %753 = vmatprep.subr.bf16.mxu0 0
        %754 = vmatpush1.bf16.msra.mxu0 0
        %755 = vmatprep.subr.bf16.mxu0 0
        %756 = vmatpush1.bf16.msra.mxu0 0
        %757 = vmatprep.subr.bf16.mxu0 0
        %758 = vmatpush1.bf16.msra.mxu0 0
        %759 = vmatprep.subr.bf16.mxu0 0
        %760 = vmatpush1.bf16.msra.mxu0 0
        %761 = vmatprep.subr.bf16.mxu0 0
        %762 = vmatpush1.bf16.msra.mxu0 0
        %763 = vmatprep.subr.bf16.mxu0 0
        %764 = vmatpush1.bf16.msra.mxu0 0
        %765 = vmatprep.subr.bf16.mxu0 0
        %766 = vmatpush1.bf16.msra.mxu0 0
        %767 = vmatprep.subr.bf16.mxu0 0
        %768 = vmatpush1.bf16.msra.mxu0 0
        %769 = vmatprep.subr.bf16.mxu0 0
        %770 = vmatpush1.bf16.msra.mxu0 0
        %771 = vmatprep.subr.bf16.mxu0 0
        %772 = vmatpush1.bf16.msra.mxu0 0
        %773 = vmatprep.subr.bf16.mxu0 0
        %774 = vmatpush1.bf16.msra.mxu0 0
        %775 = vmatprep.mubr.bf16.mxu0 0
        %776 = vmatmul.mubr.bf16.gmra.mrb[0].mxu0 %v738
        %v777 = vpop.f32.mrb[0].mxu0
        %v778 = vadd.f32 0.0, %v777
        %v779 = vpop.f32.mrb[0].mxu0
        %v780 = vadd.f32 0.0, %v779
        %v781 = vpop.f32.mrb[0].mxu0
        %v782 = vadd.f32 0.0, %v781
        %v783 = vpop.f32.mrb[0].mxu0
        %v784 = vadd.f32 0.0, %v783
        %785 = vmatprep.mubr.bf16.mxu0 0
        %786 = vmatmul.mubr.bf16.gmra.mrb[0].mxu0 %v741
        %v787 = vpop.f32.mrb[0].mxu0
        %v788 = vadd.f32 0.0, %v787
        %v789 = vpop.f32.mrb[0].mxu0
        %v790 = vadd.f32 0.0, %v789
        %v791 = vpop.f32.mrb[0].mxu0
        %v792 = vadd.f32 0.0, %v791
        %v793 = vpop.f32.mrb[0].mxu0
        %v794 = vadd.f32 0.0, %v793
        %795 = vdwg.mxu0
        %796 = vmatprep.subr.bf16.mxu0 0
        %797 = vmatpush1.bf16.msra.mxu0 %v719
        %798 = vmatprep.subr.bf16.mxu0 0
        %799 = vmatpush1.bf16.msra.mxu0 %v725
        %800 = vmatprep.subr.bf16.mxu0 0
        %801 = vmatpush1.bf16.msra.mxu0 0
        %802 = vmatprep.subr.bf16.mxu0 0
        %803 = vmatpush1.bf16.msra.mxu0 0
        %804 = vmatprep.subr.bf16.mxu0 0
        %805 = vmatpush1.bf16.msra.mxu0 0
        %806 = vmatprep.subr.bf16.mxu0 0
        %807 = vmatpush1.bf16.msra.mxu0 0
        %808 = vmatprep.subr.bf16.mxu0 0
        %809 = vmatpush1.bf16.msra.mxu0 0
        %810 = vmatprep.subr.bf16.mxu0 0
        %811 = vmatpush1.bf16.msra.mxu0 0
        %812 = vmatprep.subr.bf16.mxu0 0
        %813 = vmatpush1.bf16.msra.mxu0 0
        %814 = vmatprep.subr.bf16.mxu0 0
        %815 = vmatpush1.bf16.msra.mxu0 0
        %816 = vmatprep.subr.bf16.mxu0 0
        %817 = vmatpush1.bf16.msra.mxu0 0
        %818 = vmatprep.subr.bf16.mxu0 0
        %819 = vmatpush1.bf16.msra.mxu0 0
        %820 = vmatprep.subr.bf16.mxu0 0
        %821 = vmatpush1.bf16.msra.mxu0 0
        %822 = vmatprep.subr.bf16.mxu0 0
        %823 = vmatpush1.bf16.msra.mxu0 0
        %824 = vmatprep.subr.bf16.mxu0 0
        %825 = vmatpush1.bf16.msra.mxu0 0
        %826 = vmatprep.subr.bf16.mxu0 0
        %827 = vmatpush1.bf16.msra.mxu0 0
        %828 = vmatprep.mubr.bf16.mxu0 0
        %829 = vmatmul.mubr.bf16.gmra.mrb[0].mxu0 %v738
        %v830 = vpop.f32.mrb[0].mxu0
        %v831 = vadd.f32 0.0, %v830
        %v832 = vpop.f32.mrb[0].mxu0
        %v833 = vpop.f32.mrb[0].mxu0
        %v834 = vadd.f32 0.0, %v833
        %v835 = vpop.f32.mrb[0].mxu0
        %836 = vmatprep.mubr.bf16.mxu0 0
        %837 = vmatmul.mubr.bf16.gmra.mrb[0].mxu0 %v741
        %v838 = vpop.f32.mrb[0].mxu0
        %v839 = vadd.f32 0.0, %v838
        %v840 = vpop.f32.mrb[0].mxu0
        %v841 = vpop.f32.mrb[0].mxu0
        %v842 = vadd.f32 0.0, %v841
        %v843 = vpop.f32.mrb[0].mxu0
        %844 = vdwg.mxu0
        %v845 = vadd.f32 %v687, %v778
        %v846 = vadd.f32 %v688, %v780
        %v847 = vadd.f32 %v689, %v831
        %v848 = vadd.f32 %v690, %v782
        %v849 = vadd.f32 %v691, %v784
        %v850 = vadd.f32 %v692, %v834
        %v851 = vadd.f32 %v693, %v788
        %v852 = vadd.f32 %v694, %v790
        %v853 = vadd.f32 %v695, %v839
        %v854 = vadd.f32 %v696, %v792
        %v855 = vadd.f32 %v697, %v794
        %v856 = vadd.f32 %v698, %v842
        %s857 = scalar_lea.vmem [#allocation2], 64
        %v858 = vld [vmem:[%s857] sm:$0xf]
        %v859 = vld [vmem:[%s857 + $0x4] sm:$0xf]
        %v860 = vld [vmem:[%s857 + $0x8] sm:$0xf]
        %v861 = vld [vmem:[%s857 + $0xc] sm:$0xf]
        %v866 = vunpack.c.l.b16 %v858
        %v867 = vunpack.c.l.b16 %v859
        %v868 = vunpack.c.l.b16 %v860
        %v869 = vunpack.c.l.b16 %v861
        %v870 = vpack.c.b16 %v867, %v866
        %v871 = vpack.c.b16 %v869, %v868
        %872 = vrot.lane.b32.xlu0 %v279, 109
        %v873 = vpop.permute.xlu0 %872
        %874 = vrot.lane.b32.xlu0 %v280, 109
        %v875 = vpop.permute.xlu0 %874
        %876 = vrot.lane.b32.xlu0 %v281, 109
        %v877 = vpop.permute.xlu0 %876
        %878 = vrot.lane.b32.xlu0 %v282, 109
        %v879 = vpop.permute.xlu0 %878
        %880 = vrot.lane.b32.xlu0 %v283, 109
        %v881 = vpop.permute.xlu0 %880
        %882 = vrot.lane.b32.xlu0 %v284, 109
        %v883 = vpop.permute.xlu0 %882
        %vm884 = vcmask 891904
        %v885 = vsel %vm884, %v873, %v875
        %v886 = vsel %vm884, %v875, %v877
        %v887 = vsel %vm884, %v879, %v881
        %v888 = vsel %vm884, %v881, %v883
        %v896 = vsel %vm308, %v870, 0
        %v899 = vsel %vm308, %v871, 0
        %901 = vmatprep.subr.bf16.mxu0 %v886
        %902 = vmatpush1.bf16.msra.mxu0 %v885
        %903 = vmatprep.subr.bf16.mxu0 %v888
        %904 = vmatpush1.bf16.msra.mxu0 %v887
        %905 = vmatprep.subr.bf16.mxu0 0
        %906 = vmatpush1.bf16.msra.mxu0 0
        %907 = vmatprep.subr.bf16.mxu0 0
        %908 = vmatpush1.bf16.msra.mxu0 0
        %909 = vmatprep.subr.bf16.mxu0 0
        %910 = vmatpush1.bf16.msra.mxu0 0
        %911 = vmatprep.subr.bf16.mxu0 0
        %912 = vmatpush1.bf16.msra.mxu0 0
        %913 = vmatprep.subr.bf16.mxu0 0
        %914 = vmatpush1.bf16.msra.mxu0 0
        %915 = vmatprep.subr.bf16.mxu0 0
        %916 = vmatpush1.bf16.msra.mxu0 0
        %917 = vmatprep.subr.bf16.mxu0 0
        %918 = vmatpush1.bf16.msra.mxu0 0
        %919 = vmatprep.subr.bf16.mxu0 0
        %920 = vmatpush1.bf16.msra.mxu0 0
        %921 = vmatprep.subr.bf16.mxu0 0
        %922 = vmatpush1.bf16.msra.mxu0 0
        %923 = vmatprep.subr.bf16.mxu0 0
        %924 = vmatpush1.bf16.msra.mxu0 0
        %925 = vmatprep.subr.bf16.mxu0 0
        %926 = vmatpush1.bf16.msra.mxu0 0
        %927 = vmatprep.subr.bf16.mxu0 0
        %928 = vmatpush1.bf16.msra.mxu0 0
        %929 = vmatprep.subr.bf16.mxu0 0
        %930 = vmatpush1.bf16.msra.mxu0 0
        %931 = vmatprep.subr.bf16.mxu0 0
        %932 = vmatpush1.bf16.msra.mxu0 0
        %933 = vmatprep.mubr.bf16.mxu0 0
        %934 = vmatmul.mubr.bf16.gmra.mrb[0].mxu0 %v896
        %v935 = vpop.f32.mrb[0].mxu0
        %v936 = vadd.f32 0.0, %v935
        %v937 = vpop.f32.mrb[0].mxu0
        %v938 = vadd.f32 0.0, %v937
        %v939 = vpop.f32.mrb[0].mxu0
        %v940 = vadd.f32 0.0, %v939
        %v941 = vpop.f32.mrb[0].mxu0
        %v942 = vadd.f32 0.0, %v941
        %943 = vmatprep.mubr.bf16.mxu0 0
        %944 = vmatmul.mubr.bf16.gmra.mrb[0].mxu0 %v899
        %v945 = vpop.f32.mrb[0].mxu0
        %v946 = vadd.f32 0.0, %v945
        %v947 = vpop.f32.mrb[0].mxu0
        %v948 = vadd.f32 0.0, %v947
        %v949 = vpop.f32.mrb[0].mxu0
        %v950 = vadd.f32 0.0, %v949
        %v951 = vpop.f32.mrb[0].mxu0
        %v952 = vadd.f32 0.0, %v951
        %953 = vdwg.mxu0
        %954 = vmatprep.subr.bf16.mxu0 0
        %955 = vmatpush1.bf16.msra.mxu0 %v877
        %956 = vmatprep.subr.bf16.mxu0 0
        %957 = vmatpush1.bf16.msra.mxu0 %v883
        %958 = vmatprep.subr.bf16.mxu0 0
        %959 = vmatpush1.bf16.msra.mxu0 0
        %960 = vmatprep.subr.bf16.mxu0 0
        %961 = vmatpush1.bf16.msra.mxu0 0
        %962 = vmatprep.subr.bf16.mxu0 0
        %963 = vmatpush1.bf16.msra.mxu0 0
        %964 = vmatprep.subr.bf16.mxu0 0
        %965 = vmatpush1.bf16.msra.mxu0 0
        %966 = vmatprep.subr.bf16.mxu0 0
        %967 = vmatpush1.bf16.msra.mxu0 0
        %968 = vmatprep.subr.bf16.mxu0 0
        %969 = vmatpush1.bf16.msra.mxu0 0
        %970 = vmatprep.subr.bf16.mxu0 0
        %971 = vmatpush1.bf16.msra.mxu0 0
        %972 = vmatprep.subr.bf16.mxu0 0
        %973 = vmatpush1.bf16.msra.mxu0 0
        %974 = vmatprep.subr.bf16.mxu0 0
        %975 = vmatpush1.bf16.msra.mxu0 0
        %976 = vmatprep.subr.bf16.mxu0 0
        %977 = vmatpush1.bf16.msra.mxu0 0
        %978 = vmatprep.subr.bf16.mxu0 0
        %979 = vmatpush1.bf16.msra.mxu0 0
        %980 = vmatprep.subr.bf16.mxu0 0
        %981 = vmatpush1.bf16.msra.mxu0 0
        %982 = vmatprep.subr.bf16.mxu0 0
        %983 = vmatpush1.bf16.msra.mxu0 0
        %984 = vmatprep.subr.bf16.mxu0 0
        %985 = vmatpush1.bf16.msra.mxu0 0
        %986 = vmatprep.mubr.bf16.mxu0 0
        %987 = vmatmul.mubr.bf16.gmra.mrb[0].mxu0 %v896
        %v988 = vpop.f32.mrb[0].mxu0
        %v989 = vadd.f32 0.0, %v988
        %v990 = vpop.f32.mrb[0].mxu0
        %v991 = vpop.f32.mrb[0].mxu0
        %v992 = vadd.f32 0.0, %v991
        %v993 = vpop.f32.mrb[0].mxu0
        %994 = vmatprep.mubr.bf16.mxu0 0
        %995 = vmatmul.mubr.bf16.gmra.mrb[0].mxu0 %v899
        %v996 = vpop.f32.mrb[0].mxu0
        %v997 = vadd.f32 0.0, %v996
        %v998 = vpop.f32.mrb[0].mxu0
        %v999 = vpop.f32.mrb[0].mxu0
        %v1000 = vadd.f32 0.0, %v999
        %v1001 = vpop.f32.mrb[0].mxu0
        %1002 = vdwg.mxu0
        %v1003 = vadd.f32 %v845, %v936
        %v1004 = vadd.f32 %v846, %v938
        %v1005 = vadd.f32 %v847, %v989
        %v1006 = vadd.f32 %v848, %v940
        %v1007 = vadd.f32 %v849, %v942
        %v1008 = vadd.f32 %v850, %v992
        %v1009 = vadd.f32 %v851, %v946
        %v1010 = vadd.f32 %v852, %v948
        %v1011 = vadd.f32 %v853, %v997
        %v1012 = vadd.f32 %v854, %v950
        %v1013 = vadd.f32 %v855, %v952
        %v1014 = vadd.f32 %v856, %v1000
        %s1015 = scalar_lea.vmem [#allocation2], 80
        %v1016 = vld [vmem:[%s1015] sm:$0xf]
        %v1017 = vld [vmem:[%s1015 + $0x4] sm:$0xf]
        %v1018 = vld [vmem:[%s1015 + $0x8] sm:$0xf]
        %v1019 = vld [vmem:[%s1015 + $0xc] sm:$0xf]
        %v1024 = vunpack.c.l.b16 %v1016
        %v1025 = vunpack.c.l.b16 %v1017
        %v1026 = vunpack.c.l.b16 %v1018
        %v1027 = vunpack.c.l.b16 %v1019
        %v1028 = vpack.c.b16 %v1025, %v1024
        %v1029 = vpack.c.b16 %v1027, %v1026
        %1030 = vrot.lane.b32.xlu0 %v279, 108
        %v1031 = vpop.permute.xlu0 %1030
        %1032 = vrot.lane.b32.xlu0 %v280, 108
        %v1033 = vpop.permute.xlu0 %1032
        %1034 = vrot.lane.b32.xlu0 %v281, 108
        %v1035 = vpop.permute.xlu0 %1034
        %1036 = vrot.lane.b32.xlu0 %v282, 108
        %v1037 = vpop.permute.xlu0 %1036
        %1038 = vrot.lane.b32.xlu0 %v283, 108
        %v1039 = vpop.permute.xlu0 %1038
        %1040 = vrot.lane.b32.xlu0 %v284, 108
        %v1041 = vpop.permute.xlu0 %1040
        %vm1042 = vcmask 883712
        %v1043 = vsel %vm1042, %v1031, %v1033
        %v1044 = vsel %vm1042, %v1033, %v1035
        %v1045 = vsel %vm1042, %v1037, %v1039
        %v1046 = vsel %vm1042, %v1039, %v1041
        %v1054 = vsel %vm308, %v1028, 0
        %v1057 = vsel %vm308, %v1029, 0
        %1059 = vmatprep.subr.bf16.mxu0 %v1044
        %1060 = vmatpush1.bf16.msra.mxu0 %v1043
        %1061 = vmatprep.subr.bf16.mxu0 %v1046
        %1062 = vmatpush1.bf16.msra.mxu0 %v1045
        %1063 = vmatprep.subr.bf16.mxu0 0
        %1064 = vmatpush1.bf16.msra.mxu0 0
        %1065 = vmatprep.subr.bf16.mxu0 0
        %1066 = vmatpush1.bf16.msra.mxu0 0
        %1067 = vmatprep.subr.bf16.mxu0 0
        %1068 = vmatpush1.bf16.msra.mxu0 0
        %1069 = vmatprep.subr.bf16.mxu0 0
        %1070 = vmatpush1.bf16.msra.mxu0 0
        %1071 = vmatprep.subr.bf16.mxu0 0
        %1072 = vmatpush1.bf16.msra.mxu0 0
        %1073 = vmatprep.subr.bf16.mxu0 0
        %1074 = vmatpush1.bf16.msra.mxu0 0
        %1075 = vmatprep.subr.bf16.mxu0 0
        %1076 = vmatpush1.bf16.msra.mxu0 0
        %1077 = vmatprep.subr.bf16.mxu0 0
        %1078 = vmatpush1.bf16.msra.mxu0 0
        %1079 = vmatprep.subr.bf16.mxu0 0
        %1080 = vmatpush1.bf16.msra.mxu0 0
        %1081 = vmatprep.subr.bf16.mxu0 0
        %1082 = vmatpush1.bf16.msra.mxu0 0
        %1083 = vmatprep.subr.bf16.mxu0 0
        %1084 = vmatpush1.bf16.msra.mxu0 0
        %1085 = vmatprep.subr.bf16.mxu0 0
        %1086 = vmatpush1.bf16.msra.mxu0 0
        %1087 = vmatprep.subr.bf16.mxu0 0
        %1088 = vmatpush1.bf16.msra.mxu0 0
        %1089 = vmatprep.subr.bf16.mxu0 0
        %1090 = vmatpush1.bf16.msra.mxu0 0
        %1091 = vmatprep.mubr.bf16.mxu0 0
        %1092 = vmatmul.mubr.bf16.gmra.mrb[0].mxu0 %v1054
        %v1093 = vpop.f32.mrb[0].mxu0
        %v1094 = vadd.f32 0.0, %v1093
        %v1095 = vpop.f32.mrb[0].mxu0
        %v1096 = vadd.f32 0.0, %v1095
        %v1097 = vpop.f32.mrb[0].mxu0
        %v1098 = vadd.f32 0.0, %v1097
        %v1099 = vpop.f32.mrb[0].mxu0
        %v1100 = vadd.f32 0.0, %v1099
        %1101 = vmatprep.mubr.bf16.mxu0 0
        %1102 = vmatmul.mubr.bf16.gmra.mrb[0].mxu0 %v1057
        %v1103 = vpop.f32.mrb[0].mxu0
        %v1104 = vadd.f32 0.0, %v1103
        %v1105 = vpop.f32.mrb[0].mxu0
        %v1106 = vadd.f32 0.0, %v1105
        %v1107 = vpop.f32.mrb[0].mxu0
        %v1108 = vadd.f32 0.0, %v1107
        %v1109 = vpop.f32.mrb[0].mxu0
        %v1110 = vadd.f32 0.0, %v1109
        %1111 = vdwg.mxu0
        %1112 = vmatprep.subr.bf16.mxu0 0
        %1113 = vmatpush1.bf16.msra.mxu0 %v1035
        %1114 = vmatprep.subr.bf16.mxu0 0
        %1115 = vmatpush1.bf16.msra.mxu0 %v1041
        %1116 = vmatprep.subr.bf16.mxu0 0
        %1117 = vmatpush1.bf16.msra.mxu0 0
        %1118 = vmatprep.subr.bf16.mxu0 0
        %1119 = vmatpush1.bf16.msra.mxu0 0
        %1120 = vmatprep.subr.bf16.mxu0 0
        %1121 = vmatpush1.bf16.msra.mxu0 0
        %1122 = vmatprep.subr.bf16.mxu0 0
        %1123 = vmatpush1.bf16.msra.mxu0 0
        %1124 = vmatprep.subr.bf16.mxu0 0
        %1125 = vmatpush1.bf16.msra.mxu0 0
        %1126 = vmatprep.subr.bf16.mxu0 0
        %1127 = vmatpush1.bf16.msra.mxu0 0
        %1128 = vmatprep.subr.bf16.mxu0 0
        %1129 = vmatpush1.bf16.msra.mxu0 0
        %1130 = vmatprep.subr.bf16.mxu0 0
        %1131 = vmatpush1.bf16.msra.mxu0 0
        %1132 = vmatprep.subr.bf16.mxu0 0
        %1133 = vmatpush1.bf16.msra.mxu0 0
        %1134 = vmatprep.subr.bf16.mxu0 0
        %1135 = vmatpush1.bf16.msra.mxu0 0
        %1136 = vmatprep.subr.bf16.mxu0 0
        %1137 = vmatpush1.bf16.msra.mxu0 0
        %1138 = vmatprep.subr.bf16.mxu0 0
        %1139 = vmatpush1.bf16.msra.mxu0 0
        %1140 = vmatprep.subr.bf16.mxu0 0
        %1141 = vmatpush1.bf16.msra.mxu0 0
        %1142 = vmatprep.subr.bf16.mxu0 0
        %1143 = vmatpush1.bf16.msra.mxu0 0
        %1144 = vmatprep.mubr.bf16.mxu0 0
        %1145 = vmatmul.mubr.bf16.gmra.mrb[0].mxu0 %v1054
        %v1146 = vpop.f32.mrb[0].mxu0
        %v1147 = vadd.f32 0.0, %v1146
        %v1148 = vpop.f32.mrb[0].mxu0
        %v1149 = vpop.f32.mrb[0].mxu0
        %v1150 = vadd.f32 0.0, %v1149
        %v1151 = vpop.f32.mrb[0].mxu0
        %1152 = vmatprep.mubr.bf16.mxu0 0
        %1153 = vmatmul.mubr.bf16.gmra.mrb[0].mxu0 %v1057
        %v1154 = vpop.f32.mrb[0].mxu0
        %v1155 = vadd.f32 0.0, %v1154
        %v1156 = vpop.f32.mrb[0].mxu0
        %v1157 = vpop.f32.mrb[0].mxu0
        %v1158 = vadd.f32 0.0, %v1157
        %v1159 = vpop.f32.mrb[0].mxu0
        %1160 = vdwg.mxu0
        %v1161 = vadd.f32 %v1003, %v1094
        %v1162 = vadd.f32 %v1004, %v1096
        %v1163 = vadd.f32 %v1005, %v1147
        %v1164 = vadd.f32 %v1006, %v1098
        %v1165 = vadd.f32 %v1007, %v1100
        %v1166 = vadd.f32 %v1008, %v1150
        %v1167 = vadd.f32 %v1009, %v1104
        %v1168 = vadd.f32 %v1010, %v1106
        %v1169 = vadd.f32 %v1011, %v1155
        %v1170 = vadd.f32 %v1012, %v1108
        %v1171 = vadd.f32 %v1013, %v1110
        %v1172 = vadd.f32 %v1014, %v1158
        %s1173 = scalar_lea.vmem [#allocation2], 96
        %v1174 = vld [vmem:[%s1173] sm:$0xf]
        %v1175 = vld [vmem:[%s1173 + $0x4] sm:$0xf]
        %v1176 = vld [vmem:[%s1173 + $0x8] sm:$0xf]
        %v1177 = vld [vmem:[%s1173 + $0xc] sm:$0xf]
        %v1182 = vunpack.c.l.b16 %v1174
        %v1183 = vunpack.c.l.b16 %v1175
        %v1184 = vunpack.c.l.b16 %v1176
        %v1185 = vunpack.c.l.b16 %v1177
        %v1186 = vpack.c.b16 %v1183, %v1182
        %v1187 = vpack.c.b16 %v1185, %v1184
        %1188 = vrot.lane.b32.xlu0 %v279, 92
        %v1189 = vpop.permute.xlu0 %1188
        %1190 = vrot.lane.b32.xlu0 %v280, 92
        %v1191 = vpop.permute.xlu0 %1190
        %1192 = vrot.lane.b32.xlu0 %v281, 92
        %v1193 = vpop.permute.xlu0 %1192
        %1194 = vrot.lane.b32.xlu0 %v282, 92
        %v1195 = vpop.permute.xlu0 %1194
        %1196 = vrot.lane.b32.xlu0 %v283, 92
        %v1197 = vpop.permute.xlu0 %1196
        %1198 = vrot.lane.b32.xlu0 %v284, 92
        %v1199 = vpop.permute.xlu0 %1198
        %vm1200 = vcmask 752640
        %v1201 = vsel %vm1200, %v1189, %v1191
        %v1202 = vsel %vm1200, %v1191, %v1193
        %v1203 = vsel %vm1200, %v1195, %v1197
        %v1204 = vsel %vm1200, %v1197, %v1199
        %v1212 = vsel %vm308, %v1186, 0
        %v1215 = vsel %vm308, %v1187, 0
        %1217 = vmatprep.subr.bf16.mxu0 %v1202
        %1218 = vmatpush1.bf16.msra.mxu0 %v1201
        %1219 = vmatprep.subr.bf16.mxu0 %v1204
        %1220 = vmatpush1.bf16.msra.mxu0 %v1203
        %1221 = vmatprep.subr.bf16.mxu0 0
        %1222 = vmatpush1.bf16.msra.mxu0 0
        %1223 = vmatprep.subr.bf16.mxu0 0
        %1224 = vmatpush1.bf16.msra.mxu0 0
        %1225 = vmatprep.subr.bf16.mxu0 0
        %1226 = vmatpush1.bf16.msra.mxu0 0
        %1227 = vmatprep.subr.bf16.mxu0 0
        %1228 = vmatpush1.bf16.msra.mxu0 0
        %1229 = vmatprep.subr.bf16.mxu0 0
        %1230 = vmatpush1.bf16.msra.mxu0 0
        %1231 = vmatprep.subr.bf16.mxu0 0
        %1232 = vmatpush1.bf16.msra.mxu0 0
        %1233 = vmatprep.subr.bf16.mxu0 0
        %1234 = vmatpush1.bf16.msra.mxu0 0
        %1235 = vmatprep.subr.bf16.mxu0 0
        %1236 = vmatpush1.bf16.msra.mxu0 0
        %1237 = vmatprep.subr.bf16.mxu0 0
        %1238 = vmatpush1.bf16.msra.mxu0 0
        %1239 = vmatprep.subr.bf16.mxu0 0
        %1240 = vmatpush1.bf16.msra.mxu0 0
        %1241 = vmatprep.subr.bf16.mxu0 0
        %1242 = vmatpush1.bf16.msra.mxu0 0
        %1243 = vmatprep.subr.bf16.mxu0 0
        %1244 = vmatpush1.bf16.msra.mxu0 0
        %1245 = vmatprep.subr.bf16.mxu0 0
        %1246 = vmatpush1.bf16.msra.mxu0 0
        %1247 = vmatprep.subr.bf16.mxu0 0
        %1248 = vmatpush1.bf16.msra.mxu0 0
        %1249 = vmatprep.mubr.bf16.mxu0 0
        %1250 = vmatmul.mubr.bf16.gmra.mrb[0].mxu0 %v1212
        %v1251 = vpop.f32.mrb[0].mxu0
        %v1252 = vadd.f32 0.0, %v1251
        %v1253 = vpop.f32.mrb[0].mxu0
        %v1254 = vadd.f32 0.0, %v1253
        %v1255 = vpop.f32.mrb[0].mxu0
        %v1256 = vadd.f32 0.0, %v1255
        %v1257 = vpop.f32.mrb[0].mxu0
        %v1258 = vadd.f32 0.0, %v1257
        %1259 = vmatprep.mubr.bf16.mxu0 0
        %1260 = vmatmul.mubr.bf16.gmra.mrb[0].mxu0 %v1215
        %v1261 = vpop.f32.mrb[0].mxu0
        %v1262 = vadd.f32 0.0, %v1261
        %v1263 = vpop.f32.mrb[0].mxu0
        %v1264 = vadd.f32 0.0, %v1263
        %v1265 = vpop.f32.mrb[0].mxu0
        %v1266 = vadd.f32 0.0, %v1265
        %v1267 = vpop.f32.mrb[0].mxu0
        %v1268 = vadd.f32 0.0, %v1267
        %1269 = vdwg.mxu0
        %1270 = vmatprep.subr.bf16.mxu0 0
        %1271 = vmatpush1.bf16.msra.mxu0 %v1193
        %1272 = vmatprep.subr.bf16.mxu0 0
        %1273 = vmatpush1.bf16.msra.mxu0 %v1199
        %1274 = vmatprep.subr.bf16.mxu0 0
        %1275 = vmatpush1.bf16.msra.mxu0 0
        %1276 = vmatprep.subr.bf16.mxu0 0
        %1277 = vmatpush1.bf16.msra.mxu0 0
        %1278 = vmatprep.subr.bf16.mxu0 0
        %1279 = vmatpush1.bf16.msra.mxu0 0
        %1280 = vmatprep.subr.bf16.mxu0 0
        %1281 = vmatpush1.bf16.msra.mxu0 0
        %1282 = vmatprep.subr.bf16.mxu0 0
        %1283 = vmatpush1.bf16.msra.mxu0 0
        %1284 = vmatprep.subr.bf16.mxu0 0
        %1285 = vmatpush1.bf16.msra.mxu0 0
        %1286 = vmatprep.subr.bf16.mxu0 0
        %1287 = vmatpush1.bf16.msra.mxu0 0
        %1288 = vmatprep.subr.bf16.mxu0 0
        %1289 = vmatpush1.bf16.msra.mxu0 0
        %1290 = vmatprep.subr.bf16.mxu0 0
        %1291 = vmatpush1.bf16.msra.mxu0 0
        %1292 = vmatprep.subr.bf16.mxu0 0
        %1293 = vmatpush1.bf16.msra.mxu0 0
        %1294 = vmatprep.subr.bf16.mxu0 0
        %1295 = vmatpush1.bf16.msra.mxu0 0
        %1296 = vmatprep.subr.bf16.mxu0 0
        %1297 = vmatpush1.bf16.msra.mxu0 0
        %1298 = vmatprep.subr.bf16.mxu0 0
        %1299 = vmatpush1.bf16.msra.mxu0 0
        %1300 = vmatprep.subr.bf16.mxu0 0
        %1301 = vmatpush1.bf16.msra.mxu0 0
        %1302 = vmatprep.mubr.bf16.mxu0 0
        %1303 = vmatmul.mubr.bf16.gmra.mrb[0].mxu0 %v1212
        %v1304 = vpop.f32.mrb[0].mxu0
        %v1305 = vadd.f32 0.0, %v1304
        %v1306 = vpop.f32.mrb[0].mxu0
        %v1307 = vpop.f32.mrb[0].mxu0
        %v1308 = vadd.f32 0.0, %v1307
        %v1309 = vpop.f32.mrb[0].mxu0
        %1310 = vmatprep.mubr.bf16.mxu0 0
        %1311 = vmatmul.mubr.bf16.gmra.mrb[0].mxu0 %v1215
        %v1312 = vpop.f32.mrb[0].mxu0
        %v1313 = vadd.f32 0.0, %v1312
        %v1314 = vpop.f32.mrb[0].mxu0
        %v1315 = vpop.f32.mrb[0].mxu0
        %v1316 = vadd.f32 0.0, %v1315
        %v1317 = vpop.f32.mrb[0].mxu0
        %1318 = vdwg.mxu0
        %v1319 = vadd.f32 %v1161, %v1252
        %v1320 = vadd.f32 %v1162, %v1254
        %v1321 = vadd.f32 %v1163, %v1305
        %v1322 = vadd.f32 %v1164, %v1256
        %v1323 = vadd.f32 %v1165, %v1258
        %v1324 = vadd.f32 %v1166, %v1308
        %v1325 = vadd.f32 %v1167, %v1262
        %v1326 = vadd.f32 %v1168, %v1264
        %v1327 = vadd.f32 %v1169, %v1313
        %v1328 = vadd.f32 %v1170, %v1266
        %v1329 = vadd.f32 %v1171, %v1268
        %v1330 = vadd.f32 %v1172, %v1316
        %s1331 = scalar_lea.vmem [#allocation2], 112
        %v1332 = vld [vmem:[%s1331] sm:$0xf]
        %v1333 = vld [vmem:[%s1331 + $0x4] sm:$0xf]
        %v1334 = vld [vmem:[%s1331 + $0x8] sm:$0xf]
        %v1335 = vld [vmem:[%s1331 + $0xc] sm:$0xf]
        %v1340 = vunpack.c.l.b16 %v1332
        %v1341 = vunpack.c.l.b16 %v1333
        %v1342 = vunpack.c.l.b16 %v1334
        %v1343 = vunpack.c.l.b16 %v1335
        %v1344 = vpack.c.b16 %v1341, %v1340
        %v1345 = vpack.c.b16 %v1343, %v1342
        %1346 = vrot.lane.b32.xlu0 %v279, 91
        %v1347 = vpop.permute.xlu0 %1346
        %1348 = vrot.lane.b32.xlu0 %v280, 91
        %v1349 = vpop.permute.xlu0 %1348
        %1350 = vrot.lane.b32.xlu0 %v281, 91
        %v1351 = vpop.permute.xlu0 %1350
        %1352 = vrot.lane.b32.xlu0 %v282, 91
        %v1353 = vpop.permute.xlu0 %1352
        %1354 = vrot.lane.b32.xlu0 %v283, 91
        %v1355 = vpop.permute.xlu0 %1354
        %1356 = vrot.lane.b32.xlu0 %v284, 91
        %v1357 = vpop.permute.xlu0 %1356
        %vm1358 = vcmask 744448
        %v1359 = vsel %vm1358, %v1347, %v1349
        %v1360 = vsel %vm1358, %v1349, %v1351
        %v1361 = vsel %vm1358, %v1353, %v1355
        %v1362 = vsel %vm1358, %v1355, %v1357
        %v1370 = vsel %vm308, %v1344, 0
        %v1373 = vsel %vm308, %v1345, 0
        %1375 = vmatprep.subr.bf16.mxu0 %v1360
        %1376 = vmatpush1.bf16.msra.mxu0 %v1359
        %1377 = vmatprep.subr.bf16.mxu0 %v1362
        %1378 = vmatpush1.bf16.msra.mxu0 %v1361
        %1379 = vmatprep.subr.bf16.mxu0 0
        %1380 = vmatpush1.bf16.msra.mxu0 0
        %1381 = vmatprep.subr.bf16.mxu0 0
        %1382 = vmatpush1.bf16.msra.mxu0 0
        %1383 = vmatprep.subr.bf16.mxu0 0
        %1384 = vmatpush1.bf16.msra.mxu0 0
        %1385 = vmatprep.subr.bf16.mxu0 0
        %1386 = vmatpush1.bf16.msra.mxu0 0
        %1387 = vmatprep.subr.bf16.mxu0 0
        %1388 = vmatpush1.bf16.msra.mxu0 0
        %1389 = vmatprep.subr.bf16.mxu0 0
        %1390 = vmatpush1.bf16.msra.mxu0 0
        %1391 = vmatprep.subr.bf16.mxu0 0
        %1392 = vmatpush1.bf16.msra.mxu0 0
        %1393 = vmatprep.subr.bf16.mxu0 0
        %1394 = vmatpush1.bf16.msra.mxu0 0
        %1395 = vmatprep.subr.bf16.mxu0 0
        %1396 = vmatpush1.bf16.msra.mxu0 0
        %1397 = vmatprep.subr.bf16.mxu0 0
        %1398 = vmatpush1.bf16.msra.mxu0 0
        %1399 = vmatprep.subr.bf16.mxu0 0
        %1400 = vmatpush1.bf16.msra.mxu0 0
        %1401 = vmatprep.subr.bf16.mxu0 0
        %1402 = vmatpush1.bf16.msra.mxu0 0
        %1403 = vmatprep.subr.bf16.mxu0 0
        %1404 = vmatpush1.bf16.msra.mxu0 0
        %1405 = vmatprep.subr.bf16.mxu0 0
        %1406 = vmatpush1.bf16.msra.mxu0 0
        %1407 = vmatprep.mubr.bf16.mxu0 0
        %1408 = vmatmul.mubr.bf16.gmra.mrb[0].mxu0 %v1370
        %v1409 = vpop.f32.mrb[0].mxu0
        %v1410 = vadd.f32 0.0, %v1409
        %v1411 = vpop.f32.mrb[0].mxu0
        %v1412 = vadd.f32 0.0, %v1411
        %v1413 = vpop.f32.mrb[0].mxu0
        %v1414 = vadd.f32 0.0, %v1413
        %v1415 = vpop.f32.mrb[0].mxu0
        %v1416 = vadd.f32 0.0, %v1415
        %1417 = vmatprep.mubr.bf16.mxu0 0
        %1418 = vmatmul.mubr.bf16.gmra.mrb[0].mxu0 %v1373
        %v1419 = vpop.f32.mrb[0].mxu0
        %v1420 = vadd.f32 0.0, %v1419
        %v1421 = vpop.f32.mrb[0].mxu0
        %v1422 = vadd.f32 0.0, %v1421
        %v1423 = vpop.f32.mrb[0].mxu0
        %v1424 = vadd.f32 0.0, %v1423
        %v1425 = vpop.f32.mrb[0].mxu0
        %v1426 = vadd.f32 0.0, %v1425
        %1427 = vdwg.mxu0
        %1428 = vmatprep.subr.bf16.mxu0 0
        %1429 = vmatpush1.bf16.msra.mxu0 %v1351
        %1430 = vmatprep.subr.bf16.mxu0 0
        %1431 = vmatpush1.bf16.msra.mxu0 %v1357
        %1432 = vmatprep.subr.bf16.mxu0 0
        %1433 = vmatpush1.bf16.msra.mxu0 0
        %1434 = vmatprep.subr.bf16.mxu0 0
        %1435 = vmatpush1.bf16.msra.mxu0 0
        %1436 = vmatprep.subr.bf16.mxu0 0
        %1437 = vmatpush1.bf16.msra.mxu0 0
        %1438 = vmatprep.subr.bf16.mxu0 0
        %1439 = vmatpush1.bf16.msra.mxu0 0
        %1440 = vmatprep.subr.bf16.mxu0 0
        %1441 = vmatpush1.bf16.msra.mxu0 0
        %1442 = vmatprep.subr.bf16.mxu0 0
        %1443 = vmatpush1.bf16.msra.mxu0 0
        %1444 = vmatprep.subr.bf16.mxu0 0
        %1445 = vmatpush1.bf16.msra.mxu0 0
        %1446 = vmatprep.subr.bf16.mxu0 0
        %1447 = vmatpush1.bf16.msra.mxu0 0
        %1448 = vmatprep.subr.bf16.mxu0 0
        %1449 = vmatpush1.bf16.msra.mxu0 0
        %1450 = vmatprep.subr.bf16.mxu0 0
        %1451 = vmatpush1.bf16.msra.mxu0 0
        %1452 = vmatprep.subr.bf16.mxu0 0
        %1453 = vmatpush1.bf16.msra.mxu0 0
        %1454 = vmatprep.subr.bf16.mxu0 0
        %1455 = vmatpush1.bf16.msra.mxu0 0
        %1456 = vmatprep.subr.bf16.mxu0 0
        %1457 = vmatpush1.bf16.msra.mxu0 0
        %1458 = vmatprep.subr.bf16.mxu0 0
        %1459 = vmatpush1.bf16.msra.mxu0 0
        %1460 = vmatprep.mubr.bf16.mxu0 0
        %1461 = vmatmul.mubr.bf16.gmra.mrb[0].mxu0 %v1370
        %v1462 = vpop.f32.mrb[0].mxu0
        %v1463 = vadd.f32 0.0, %v1462
        %v1464 = vpop.f32.mrb[0].mxu0
        %v1465 = vpop.f32.mrb[0].mxu0
        %v1466 = vadd.f32 0.0, %v1465
        %v1467 = vpop.f32.mrb[0].mxu0
        %1468 = vmatprep.mubr.bf16.mxu0 0
        %1469 = vmatmul.mubr.bf16.gmra.mrb[0].mxu0 %v1373
        %v1470 = vpop.f32.mrb[0].mxu0
        %v1471 = vadd.f32 0.0, %v1470
        %v1472 = vpop.f32.mrb[0].mxu0
        %v1473 = vpop.f32.mrb[0].mxu0
        %v1474 = vadd.f32 0.0, %v1473
        %v1475 = vpop.f32.mrb[0].mxu0
        %1476 = vdwg.mxu0
        %v1477 = vadd.f32 %v1319, %v1410
        %v1478 = vadd.f32 %v1320, %v1412
        %v1479 = vadd.f32 %v1321, %v1463
        %v1480 = vadd.f32 %v1322, %v1414
        %v1481 = vadd.f32 %v1323, %v1416
        %v1482 = vadd.f32 %v1324, %v1466
        %v1483 = vadd.f32 %v1325, %v1420
        %v1484 = vadd.f32 %v1326, %v1422
        %v1485 = vadd.f32 %v1327, %v1471
        %v1486 = vadd.f32 %v1328, %v1424
        %v1487 = vadd.f32 %v1329, %v1426
        %v1488 = vadd.f32 %v1330, %v1474
        %s1489 = scalar_lea.vmem [#allocation2], 128
        %v1490 = vld [vmem:[%s1489] sm:$0xf]
        %v1491 = vld [vmem:[%s1489 + $0x4] sm:$0xf]
        %v1492 = vld [vmem:[%s1489 + $0x8] sm:$0xf]
        %v1493 = vld [vmem:[%s1489 + $0xc] sm:$0xf]
        %v1498 = vunpack.c.l.b16 %v1490
        %v1499 = vunpack.c.l.b16 %v1491
        %v1500 = vunpack.c.l.b16 %v1492
        %v1501 = vunpack.c.l.b16 %v1493
        %v1502 = vpack.c.b16 %v1499, %v1498
        %v1503 = vpack.c.b16 %v1501, %v1500
        %1504 = vrot.lane.b32.xlu0 %v279, 90
        %v1505 = vpop.permute.xlu0 %1504
        %1506 = vrot.lane.b32.xlu0 %v280, 90
        %v1507 = vpop.permute.xlu0 %1506
        %1508 = vrot.lane.b32.xlu0 %v281, 90
        %v1509 = vpop.permute.xlu0 %1508
        %1510 = vrot.lane.b32.xlu0 %v282, 90
        %v1511 = vpop.permute.xlu0 %1510
        %1512 = vrot.lane.b32.xlu0 %v283, 90
        %v1513 = vpop.permute.xlu0 %1512
        %1514 = vrot.lane.b32.xlu0 %v284, 90
        %v1515 = vpop.permute.xlu0 %1514
        %vm1516 = vcmask 736256
        %v1517 = vsel %vm1516, %v1505, %v1507
        %v1518 = vsel %vm1516, %v1507, %v1509
        %v1519 = vsel %vm1516, %v1511, %v1513
        %v1520 = vsel %vm1516, %v1513, %v1515
        %v1528 = vsel %vm308, %v1502, 0
        %v1531 = vsel %vm308, %v1503, 0
        %1533 = vmatprep.subr.bf16.mxu0 %v1518
        %1534 = vmatpush1.bf16.msra.mxu0 %v1517
        %1535 = vmatprep.subr.bf16.mxu0 %v1520
        %1536 = vmatpush1.bf16.msra.mxu0 %v1519
        %1537 = vmatprep.subr.bf16.mxu0 0
        %1538 = vmatpush1.bf16.msra.mxu0 0
        %1539 = vmatprep.subr.bf16.mxu0 0
        %1540 = vmatpush1.bf16.msra.mxu0 0
        %1541 = vmatprep.subr.bf16.mxu0 0
        %1542 = vmatpush1.bf16.msra.mxu0 0
        %1543 = vmatprep.subr.bf16.mxu0 0
        %1544 = vmatpush1.bf16.msra.mxu0 0
        %1545 = vmatprep.subr.bf16.mxu0 0
        %1546 = vmatpush1.bf16.msra.mxu0 0
        %1547 = vmatprep.subr.bf16.mxu0 0
        %1548 = vmatpush1.bf16.msra.mxu0 0
        %1549 = vmatprep.subr.bf16.mxu0 0
        %1550 = vmatpush1.bf16.msra.mxu0 0
        %1551 = vmatprep.subr.bf16.mxu0 0
        %1552 = vmatpush1.bf16.msra.mxu0 0
        %1553 = vmatprep.subr.bf16.mxu0 0
        %1554 = vmatpush1.bf16.msra.mxu0 0
        %1555 = vmatprep.subr.bf16.mxu0 0
        %1556 = vmatpush1.bf16.msra.mxu0 0
        %1557 = vmatprep.subr.bf16.mxu0 0
        %1558 = vmatpush1.bf16.msra.mxu0 0
        %1559 = vmatprep.subr.bf16.mxu0 0
        %1560 = vmatpush1.bf16.msra.mxu0 0
        %1561 = vmatprep.subr.bf16.mxu0 0
        %1562 = vmatpush1.bf16.msra.mxu0 0
        %1563 = vmatprep.subr.bf16.mxu0 0
        %1564 = vmatpush1.bf16.msra.mxu0 0
        %1565 = vmatprep.mubr.bf16.mxu0 0
        %1566 = vmatmul.mubr.bf16.gmra.mrb[0].mxu0 %v1528
        %v1567 = vpop.f32.mrb[0].mxu0
        %v1568 = vadd.f32 0.0, %v1567
        %v1569 = vpop.f32.mrb[0].mxu0
        %v1570 = vadd.f32 0.0, %v1569
        %v1571 = vpop.f32.mrb[0].mxu0
        %v1572 = vadd.f32 0.0, %v1571
        %v1573 = vpop.f32.mrb[0].mxu0
        %v1574 = vadd.f32 0.0, %v1573
        %1575 = vmatprep.mubr.bf16.mxu0 0
        %1576 = vmatmul.mubr.bf16.gmra.mrb[0].mxu0 %v1531
        %v1577 = vpop.f32.mrb[0].mxu0
        %v1578 = vadd.f32 0.0, %v1577
        %v1579 = vpop.f32.mrb[0].mxu0
        %v1580 = vadd.f32 0.0, %v1579
        %v1581 = vpop.f32.mrb[0].mxu0
        %v1582 = vadd.f32 0.0, %v1581
        %v1583 = vpop.f32.mrb[0].mxu0
        %v1584 = vadd.f32 0.0, %v1583
        %1585 = vdwg.mxu0
        %1586 = vmatprep.subr.bf16.mxu0 0
        %1587 = vmatpush1.bf16.msra.mxu0 %v1509
        %1588 = vmatprep.subr.bf16.mxu0 0
        %1589 = vmatpush1.bf16.msra.mxu0 %v1515
        %1590 = vmatprep.subr.bf16.mxu0 0
        %1591 = vmatpush1.bf16.msra.mxu0 0
        %1592 = vmatprep.subr.bf16.mxu0 0
        %1593 = vmatpush1.bf16.msra.mxu0 0
        %1594 = vmatprep.subr.bf16.mxu0 0
        %1595 = vmatpush1.bf16.msra.mxu0 0
        %1596 = vmatprep.subr.bf16.mxu0 0
        %1597 = vmatpush1.bf16.msra.mxu0 0
        %1598 = vmatprep.subr.bf16.mxu0 0
        %1599 = vmatpush1.bf16.msra.mxu0 0
        %1600 = vmatprep.subr.bf16.mxu0 0
        %1601 = vmatpush1.bf16.msra.mxu0 0
        %1602 = vmatprep.subr.bf16.mxu0 0
        %1603 = vmatpush1.bf16.msra.mxu0 0
        %1604 = vmatprep.subr.bf16.mxu0 0
        %1605 = vmatpush1.bf16.msra.mxu0 0
        %1606 = vmatprep.subr.bf16.mxu0 0
        %1607 = vmatpush1.bf16.msra.mxu0 0
        %1608 = vmatprep.subr.bf16.mxu0 0
        %1609 = vmatpush1.bf16.msra.mxu0 0
        %1610 = vmatprep.subr.bf16.mxu0 0
        %1611 = vmatpush1.bf16.msra.mxu0 0
        %1612 = vmatprep.subr.bf16.mxu0 0
        %1613 = vmatpush1.bf16.msra.mxu0 0
        %1614 = vmatprep.subr.bf16.mxu0 0
        %1615 = vmatpush1.bf16.msra.mxu0 0
        %1616 = vmatprep.subr.bf16.mxu0 0
        %1617 = vmatpush1.bf16.msra.mxu0 0
        %1618 = vmatprep.mubr.bf16.mxu0 0
        %1619 = vmatmul.mubr.bf16.gmra.mrb[0].mxu0 %v1528
        %v1620 = vpop.f32.mrb[0].mxu0
        %v1621 = vadd.f32 0.0, %v1620
        %v1622 = vpop.f32.mrb[0].mxu0
        %v1623 = vpop.f32.mrb[0].mxu0
        %v1624 = vadd.f32 0.0, %v1623
        %v1625 = vpop.f32.mrb[0].mxu0
        %1626 = vmatprep.mubr.bf16.mxu0 0
        %1627 = vmatmul.mubr.bf16.gmra.mrb[0].mxu0 %v1531
        %v1628 = vpop.f32.mrb[0].mxu0
        %v1629 = vadd.f32 0.0, %v1628
        %v1630 = vpop.f32.mrb[0].mxu0
        %v1631 = vpop.f32.mrb[0].mxu0
        %v1632 = vadd.f32 0.0, %v1631
        %v1633 = vpop.f32.mrb[0].mxu0
        %1634 = vdwg.mxu0
        %v1635 = vadd.f32 %v1477, %v1568
        %v1636 = vadd.f32 %v1478, %v1570
        %v1637 = vadd.f32 %v1479, %v1621
        %v1638 = vadd.f32 %v1480, %v1572
        %v1639 = vadd.f32 %v1481, %v1574
        %v1640 = vadd.f32 %v1482, %v1624
        %v1641 = vadd.f32 %v1483, %v1578
        %v1642 = vadd.f32 %v1484, %v1580
        %v1643 = vadd.f32 %v1485, %v1629
        %v1644 = vadd.f32 %v1486, %v1582
        %v1645 = vadd.f32 %v1487, %v1584
        %v1646 = vadd.f32 %v1488, %v1632
        %v1647 = vld [vmem:[%s1] sm:$0xff]
        %v1648 = vld [vmem:[%s1 + $0x8] sm:$0xff]
        %v1649 = vld [vmem:[%s1 + $0x10] sm:$0xff]
        %v1650 = vld [vmem:[%s1 + $0x18] sm:$0xff]
        %1652 = vset.pattern.permute.xlu0 0
        %1653 = vperm.xlu0 %1652, %v1647
        %v1654 = vpop.permute.xlu0 %1653
        %1657 = vset.pattern.permute.xlu0 0
        %1658 = vperm.xlu0 %1657, %v1648
        %v1659 = vpop.permute.xlu0 %1658
        %1662 = vset.pattern.permute.xlu0 0
        %1663 = vperm.xlu0 %1662, %v1649
        %v1664 = vpop.permute.xlu0 %1663
        %1667 = vset.pattern.permute.xlu0 0
        %1668 = vperm.xlu0 %1667, %v1650
        %v1669 = vpop.permute.xlu0 %1668
        %v1671 = vadd.f32 %v1635, %v1654
        %v1672 = vadd.f32 %v1636, %v1654
        %v1673 = vadd.f32 %v1637, %v1654
        %v1674 = vadd.f32 %v1638, %v1659
        %v1675 = vadd.f32 %v1639, %v1659
        %v1676 = vadd.f32 %v1640, %v1659
        %v1677 = vadd.f32 %v1641, %v1664
        %v1678 = vadd.f32 %v1642, %v1664
        %v1679 = vadd.f32 %v1643, %v1664
        %v1680 = vadd.f32 %v1644, %v1669
        %v1681 = vadd.f32 %v1645, %v1669
        %v1682 = vadd.f32 %v1646, %v1669
        %v1683 = vld [vmem:[%s2] sm:$0x7]
        %v1685 = vlaneseq
        %v1686 = vshrl.u32 %v1685, 7
        %v1687 = vsub.s32 0, %v1686
        %v1688 = vrot.slane %v1683, %v1687
        %v1689 = vlaneseq
        %v1690 = vshrl.u32 %v1689, 7
        %v1691 = vsub.s32 1, %v1690
        %v1692 = vrot.slane %v1683, %v1691
        %v1693 = vlaneseq
        %v1694 = vshrl.u32 %v1693, 7
        %v1695 = vsub.s32 2, %v1694
        %v1696 = vrot.slane %v1683, %v1695
        %v1700 = vmul.f32 %v1671, %v1688
        %v1701 = vmul.f32 %v1672, %v1692
        %v1702 = vmul.f32 %v1673, %v1696
        %v1703 = vmul.f32 %v1674, %v1688
        %v1704 = vmul.f32 %v1675, %v1692
        %v1705 = vmul.f32 %v1676, %v1696
        %v1706 = vmul.f32 %v1677, %v1688
        %v1707 = vmul.f32 %v1678, %v1692
        %v1708 = vmul.f32 %v1679, %v1696
        %v1709 = vmul.f32 %v1680, %v1688
        %v1710 = vmul.f32 %v1681, %v1692
        %v1711 = vmul.f32 %v1682, %v1696
        %v1712 = vadd.f32 %v1700, %v1701
        %v1713 = vsel %vm308, %v1702, 0.0
        %v1714 = vadd.f32 %v1712, %v1713
        %1715 = vadd.xlane.f32.xlu0 %v1714
        %v1716 = vpop.xlane.xlu0 %1715
        %v1717 = vadd.f32 %v1703, %v1704
        %v1718 = vsel %vm308, %v1705, 0.0
        %v1719 = vadd.f32 %v1717, %v1718
        %1720 = vadd.xlane.f32.xlu0 %v1719
        %v1721 = vpop.xlane.xlu0 %1720
        %v1722 = vadd.f32 %v1706, %v1707
        %v1723 = vsel %vm308, %v1708, 0.0
        %v1724 = vadd.f32 %v1722, %v1723
        %1725 = vadd.xlane.f32.xlu0 %v1724
        %v1726 = vpop.xlane.xlu0 %1725
        %v1727 = vadd.f32 %v1709, %v1710
        %v1728 = vsel %vm308, %v1711, 0.0
        %v1729 = vadd.f32 %v1727, %v1728
        %1730 = vadd.xlane.f32.xlu0 %v1729
        %v1731 = vpop.xlane.xlu0 %1730
        %v1732 = vmul.f32 %v1716, 0.00390625
        %v1733 = vmul.f32 %v1721, 0.00390625
        %v1734 = vmul.f32 %v1726, 0.00390625
        %v1735 = vmul.f32 %v1731, 0.00390625
        %v1736 = vsub.f32 %v1671, %v1732
        %v1737 = vsub.f32 %v1672, %v1732
        %v1738 = vsub.f32 %v1673, %v1732
        %v1739 = vsub.f32 %v1674, %v1733
        %v1740 = vsub.f32 %v1675, %v1733
        %v1741 = vsub.f32 %v1676, %v1733
        %v1742 = vsub.f32 %v1677, %v1734
        %v1743 = vsub.f32 %v1678, %v1734
        %v1744 = vsub.f32 %v1679, %v1734
        %v1745 = vsub.f32 %v1680, %v1735
        %v1746 = vsub.f32 %v1681, %v1735
        %v1747 = vsub.f32 %v1682, %v1735
        %v1748 = vmul.f32 %v1736, %v1688
        %v1749 = vmul.f32 %v1737, %v1692
        %v1750 = vmul.f32 %v1738, %v1696
        %v1751 = vmul.f32 %v1739, %v1688
        %v1752 = vmul.f32 %v1740, %v1692
        %v1753 = vmul.f32 %v1741, %v1696
        %v1754 = vmul.f32 %v1742, %v1688
        %v1755 = vmul.f32 %v1743, %v1692
        %v1756 = vmul.f32 %v1744, %v1696
        %v1757 = vmul.f32 %v1745, %v1688
        %v1758 = vmul.f32 %v1746, %v1692
        %v1759 = vmul.f32 %v1747, %v1696
        %v1760 = vmul.f32 %v1748, %v1748
        %v1761 = vmul.f32 %v1749, %v1749
        %v1762 = vmul.f32 %v1750, %v1750
        %v1763 = vmul.f32 %v1751, %v1751
        %v1764 = vmul.f32 %v1752, %v1752
        %v1765 = vmul.f32 %v1753, %v1753
        %v1766 = vmul.f32 %v1754, %v1754
        %v1767 = vmul.f32 %v1755, %v1755
        %v1768 = vmul.f32 %v1756, %v1756
        %v1769 = vmul.f32 %v1757, %v1757
        %v1770 = vmul.f32 %v1758, %v1758
        %v1771 = vmul.f32 %v1759, %v1759
        %v1772 = vadd.f32 %v1760, %v1761
        %v1773 = vsel %vm308, %v1762, 0.0
        %v1774 = vadd.f32 %v1772, %v1773
        %1775 = vadd.xlane.f32.xlu0 %v1774
        %v1776 = vpop.xlane.xlu0 %1775
        %v1777 = vadd.f32 %v1763, %v1764
        %v1778 = vsel %vm308, %v1765, 0.0
        %v1779 = vadd.f32 %v1777, %v1778
        %1780 = vadd.xlane.f32.xlu0 %v1779
        %v1781 = vpop.xlane.xlu0 %1780
        %v1782 = vadd.f32 %v1766, %v1767
        %v1783 = vsel %vm308, %v1768, 0.0
        %v1784 = vadd.f32 %v1782, %v1783
        %1785 = vadd.xlane.f32.xlu0 %v1784
        %v1786 = vpop.xlane.xlu0 %1785
        %v1787 = vadd.f32 %v1769, %v1770
        %v1788 = vsel %vm308, %v1771, 0.0
        %v1789 = vadd.f32 %v1787, %v1788
        %1790 = vadd.xlane.f32.xlu0 %v1789
        %v1791 = vpop.xlane.xlu0 %1790
        %v1792 = vmul.f32 %v1776, 0.00390625
        %v1793 = vmul.f32 %v1781, 0.00390625
        %v1794 = vmul.f32 %v1786, 0.00390625
        %v1795 = vmul.f32 %v1791, 0.00390625
        %v1796 = vadd.f32 %v1792, 1e-05
        %v1797 = vadd.f32 %v1793, 1e-05
        %v1798 = vadd.f32 %v1794, 1e-05
        %v1799 = vadd.f32 %v1795, 1e-05
        %v1800 = vrsqrt.pop %v1796
        %v1801 = vrsqrt.pop %v1797
        %v1802 = vrsqrt.pop %v1798
        %v1803 = vrsqrt.pop %v1799
        %v1804 = vmul.f32 %v1736, %v1800
        %v1805 = vmul.f32 %v1737, %v1800
        %v1806 = vmul.f32 %v1738, %v1800
        %v1807 = vmul.f32 %v1739, %v1801
        %v1808 = vmul.f32 %v1740, %v1801
        %v1809 = vmul.f32 %v1741, %v1801
        %v1810 = vmul.f32 %v1742, %v1802
        %v1811 = vmul.f32 %v1743, %v1802
        %v1812 = vmul.f32 %v1744, %v1802
        %v1813 = vmul.f32 %v1745, %v1803
        %v1814 = vmul.f32 %v1746, %v1803
        %v1815 = vmul.f32 %v1747, %v1803
        %v1816 = vmax.f32 %v1804, 0.0
        %v1817 = vmax.f32 %v1805, 0.0
        %v1818 = vmax.f32 %v1806, 0.0
        %v1819 = vmax.f32 %v1807, 0.0
        %v1820 = vmax.f32 %v1808, 0.0
        %v1821 = vmax.f32 %v1809, 0.0
        %v1822 = vmax.f32 %v1810, 0.0
        %v1823 = vmax.f32 %v1811, 0.0
        %v1824 = vmax.f32 %v1812, 0.0
        %v1825 = vmax.f32 %v1813, 0.0
        %v1826 = vmax.f32 %v1814, 0.0
        %v1827 = vmax.f32 %v1815, 0.0
        %1828 = vst [vmem:[%s230] sm:$0xff] %v1816
        %1829 = vst [vmem:[%s230 + $0x8] sm:$0xff] %v1817
        %1830 = vst.msk [vmem:[%s230 + $0x10] sm:$0xff] %vm308, %v1818
        %1831 = vst [vmem:[%s230 + $0x18] sm:$0xff] %v1819
        %1832 = vst [vmem:[%s230 + $0x20] sm:$0xff] %v1820
        %1833 = vst.msk [vmem:[%s230 + $0x28] sm:$0xff] %vm308, %v1821
        %1834 = vst [vmem:[%s230 + $0x30] sm:$0xff] %v1822
        %1835 = vst [vmem:[%s230 + $0x38] sm:$0xff] %v1823
        %1836 = vst.msk [vmem:[%s230 + $0x40] sm:$0xff] %vm308, %v1824
        %1837 = vst [vmem:[%s230 + $0x48] sm:$0xff] %v1825
        %1838 = vst [vmem:[%s230 + $0x50] sm:$0xff] %v1826
        %1839 = vst.msk [vmem:[%s230 + $0x58] sm:$0xff] %vm308, %v1827
        %s1840 = sand.u32 %s119, 1
        %s1841 = scalar_lea.sflag [#allocation4], %s1840
        %s1842 = sand.u32 %s119, 1
        %s1843 = smul.addr %s1842, 96
        %s1844 = scalar_lea.vmem [#allocation7], %s1843
        // Predicated region
        $region45: #{tpu_custom_call.1} parent=35 // pred_check
          %p1845 = pneg %p129
        $region46: #{tpu_custom_call.1} parent=35 // pred_check_branch
          %1847 = sbr.rel (%p1845) target = $region48
        $region47: #{tpu_custom_call.1} parent=35 // pred_region
          %s1849 = ssub.s32 1536, 1536
          %1850 = vsyncadd %s1841, %s1849
          %s1851 = smul.addr %s22, 12
          %s1852 = smul.addr %s1851, 128
          %s1853 = scalar_lea.hbm %s4, %s1852
          %s1854 = sshll.u32 %s1844, 4
          %s1855 = int_to_ptr.vmem [resolvable:$true] %s1854
          %1860 = dma.vmem_to_hbm [thread:$0]  %s1855, 1536, %s1853, %s1841, 384, 384, 24
        $region48: #{tpu_custom_call.1} parent=35 // pred_fallthru
          _
      $region36: #{tpu_custom_call.1} parent=5 // pred_fallthru
        _
      %p1861 = scmp.le.s32.totalorder 2, %s17
      // Predicated region
      $region49: #{tpu_custom_call.1} parent=5 // pred_check
        %p1862 = pneg %p1861
      $region50: #{tpu_custom_call.1} parent=5 // pred_check_branch
        %1864 = sbr.rel (%p1862) target = $region52
      $region51: #{tpu_custom_call.1} parent=5 // pred_region
        %s1865 = ssub.s32 %s17, 2
        // Predicated region
        $region53: #{tpu_custom_call.1} parent=51 // pred_check
          %p1866 = pneg %p135
        $region54: #{tpu_custom_call.1} parent=51 // pred_check_branch
          %1868 = sbr.rel (%p1866) target = $region56
        $region55: #{tpu_custom_call.1} parent=51 // pred_region
          %s1869 = sand.u32 %s120, 1
          %s1870 = scalar_lea.sflag [#allocation4], %s1869
          %s1871 = sand.u32 %s120, 1
          %s1872 = smul.addr %s1871, 96
          %s1873 = scalar_lea.vmem [#allocation7], %s1872
          %1874 = dma.done %s1870, 1536
        $region56: #{tpu_custom_call.1} parent=51 // pred_fallthru
          _
      $region52: #{tpu_custom_call.1} parent=5 // pred_fallthru
        _
    $region6: #{tpu_custom_call.1} parent=1 // loop_footer
      %s21 = sadd.s32 1, %s17
    $region7: #{tpu_custom_call.1} parent=1 // loop_footer_branch
      %16 = sbr.rel target = $region3
    $region8: #{tpu_custom_call.1} parent=1 // loop_exit
      _
    %1875 = vsyncpa [#allocation3], 1
    %s1876 = scalar_lea.sflag [#allocation3], 1
    %1877 = vsyncpa %s1876, 1
    %1878 = vsyncpa [#allocation6], 1
    %s1879 = scalar_lea.sflag [#allocation6], 1
    %1880 = vsyncpa %s1879, 1
    %1881 = vsyncpa [#allocation4], 1
    %s1882 = scalar_lea.sflag [#allocation4], 1
    %1883 = vsyncpa %s1882, 1

</llo_original>
